<compile_context>
chip_gen: v5e
topology: v5e:2x2
jax: 0.10.0
libtpu: 0.0.40
codegen_flags: <defaults>
</compile_context>

<pallas_src>
import functools

import jax
import jax.numpy as jnp
from jax import lax
from jax.experimental import pallas as pl
from jax.experimental.pallas import tpu as pltpu


def _round_up(x, m):
    return (x + m - 1) // m * m


# ----------------------------- Pallas kernel --------------------------------

def _lstm_encoder_kernel(x_ref,        # (T*Bp, ni)   time-major flattened embeddings
                         wih_f_ref,    # (ni, Gp)     fwd input->gates (packed gates)
                         whh_f_ref,    # (nh, Gp)     fwd hidden->gates
                         b_f_ref,      # (1, Gp)      fwd bias (b_ih + b_hh), f32
                         wih_b_ref,    # backward direction
                         whh_b_ref,
                         b_b_ref,
                         wlin_ref,     # (nh, nop)    final linear (no bias), lane-padded
                         out_ref,      # (Bp, nop)    f32
                         # scratch:
                         gin_f, gin_b,          # (T*Bp, Gp) input-side gate pre-acts, f32
                         fwd_out, bwd_out):     # (T, Bp, nh) per-timestep hidden states
    T, Bp, nh = fwd_out.shape

    # ---- Phase 1: hoisted input projections — two big GEMMs, off the recurrent path ----
    x2d = x_ref[...]
    gin_f[...] = (jnp.dot(x2d, wih_f_ref[...], preferred_element_type=jnp.float32)
                  + b_f_ref[...])
    gin_b[...] = (jnp.dot(x2d, wih_b_ref[...], preferred_element_type=jnp.float32)
                  + b_b_ref[...])

    def cell(g_pre, h, c, whh_ref):
        # whh is read from VMEM per call (loop-invariant load; cheaper than keeping both
        # direction weights live as SSA values across the unrolled recurrence).
        whh = whh_ref[...]
        gates = g_pre + jnp.dot(h.astype(whh.dtype), whh,
                                preferred_element_type=jnp.float32)
        # PyTorch gate order (i, f, g, o); packed contiguously in the lane dimension.
        i_g = jax.nn.sigmoid(gates[:, 0 * nh:1 * nh])
        f_g = jax.nn.sigmoid(gates[:, 1 * nh:2 * nh])
        g_g = jnp.tanh(gates[:, 2 * nh:3 * nh])
        o_g = jax.nn.sigmoid(gates[:, 3 * nh:4 * nh])
        c_new = f_g * c + i_g * g_g
        h_new = o_g * jnp.tanh(c_new)
        return h_new, c_new

    unroll = True if T <= 32 else 8

    # ---- Phase 2: fused fwd/bwd recurrence; h/c carried as vreg values ----
    def fused_body(s, carry):
        hf, cf, hb, cb = carry
        rf = pl.multiple_of(s * Bp, Bp)               # fwd timestep t = s
        rb = pl.multiple_of((T - 1 - s) * Bp, Bp)     # bwd timestep t = T-1-s
        hf, cf = cell(gin_f[pl.ds(rf, Bp), :], hf, cf, whh_f_ref)
        hb, cb = cell(gin_b[pl.ds(rb, Bp), :], hb, cb, whh_b_ref)
        fwd_out[s] = hf
        bwd_out[T - 1 - s] = hb
        return (hf, cf, hb, cb)

    z = jnp.zeros((Bp, nh), jnp.float32)
    lax.fori_loop(0, T, fused_body, (z, z, z, z), unroll=unroll)

    # ---- Phase 3: bulk direction-mean + max over time + lane-dense projection ----
    avg = 0.5 * (fwd_out[...] + bwd_out[...])          # (T, Bp, nh)
    maxed = jnp.max(avg, axis=0)                       # (Bp, nh)
    out_ref[...] = jnp.dot(maxed.astype(wlin_ref.dtype), wlin_ref[...],
                           preferred_element_type=jnp.float32)


# ------------------------------- wrapper -------------------------------------

def _vmem_capacity_bytes():
    try:
        return int(pltpu.get_tpu_info().vmem_capacity_bytes)
    except Exception:
        return 128 << 20   # v5e/v6e default


def lstm_encoder_pallas(word_embed, params, nh, nc, matmul_dtype=jnp.float32):
    """word_embed: (T, B, ni) f32. Returns (mean, logvar), each (B, nc)."""
    T, B, ni = word_embed.shape
    Bp = _round_up(B, 8)            # fill the 8 sublanes of every vreg / MXU row tile
    Gp = _round_up(4 * nh, 128)     # packed-gate lane width (one 128-lane tile for nh<=32)
    nop = _round_up(2 * nc, 128)    # lane-dense output slab

    # --- layout plumbing (plain-JAX glue, done once outside the kernel) ---
    x = jnp.pad(word_embed, ((0, 0), (0, Bp - B), (0, 0)))
    x = x.reshape(T * Bp, ni).astype(matmul_dtype)       # time-major flattened

    def prep(wih, whh, b):
        # wih: (ni, 4*nh), whh: (nh, 4*nh), b: (1, 4*nh) — pad only the gate (lane) axis.
        wih_p = jnp.pad(wih, ((0, 0), (0, Gp - 4 * nh))).astype(matmul_dtype)
        whh_p = jnp.pad(whh, ((0, 0), (0, Gp - 4 * nh))).astype(matmul_dtype)
        b_p = jnp.pad(b, ((0, 0), (0, Gp - 4 * nh)))      # bias stays f32
        return wih_p, whh_p, b_p

    wih_f, whh_f, b_f = prep(params["wih_f"], params["whh_f"], params["b_f"])
    wih_b, whh_b, b_b = prep(params["wih_b"], params["whh_b"], params["b_b"])
    wlin = jnp.pad(params["wlin"], ((0, 0), (0, nop - 2 * nc))).astype(matmul_dtype)

    # --- VMEM budget: actual residency (grid-less call -> no double-buffering) + margin,
    #     capped generation-aware (v7x has 64 MiB physical VMEM per TensorCore). ---
    itemsize = jnp.dtype(matmul_dtype).itemsize
    in_bytes = (x.size * itemsize
                + (wih_f.size + wih_b.size + whh_f.size + whh_b.size + wlin.size) * itemsize
                + (b_f.size + b_b.size) * 4)
    out_bytes = Bp * nop * 4
    scratch_bytes = (2 * T * Bp * Gp + 2 * T * Bp * nh) * 4
    resident = in_bytes + out_bytes + scratch_bytes
    cap = min(96 << 20, (_vmem_capacity_bytes() * 3) // 4)    # ~96 MiB v5e/v6e, ~48 MiB v7x
    vmem_limit = int(min(max(resident + (4 << 20), 16 << 20), cap))

    vmem = pl.BlockSpec(memory_space=pltpu.MemorySpace.VMEM)
    out = pl.pallas_call(
        _lstm_encoder_kernel,
        out_shape=jax.ShapeDtypeStruct((Bp, nop), jnp.float32),
        in_specs=[vmem] * 8,
        out_specs=vmem,
        scratch_shapes=[
            pltpu.VMEM((T * Bp, Gp), jnp.float32),    # gin_f
            pltpu.VMEM((T * Bp, Gp), jnp.float32),    # gin_b
            pltpu.VMEM((T, Bp, nh), jnp.float32),     # fwd_out
            pltpu.VMEM((T, Bp, nh), jnp.float32),     # bwd_out
        ],
        compiler_params=pltpu.CompilerParams(vmem_limit_bytes=vmem_limit),
    )(x, wih_f, whh_f, b_f, wih_b, whh_b, b_b, wlin)

    out = out[:B, :2 * nc]
    return out[:, :nc], out[:, nc:]


# --------------------------- pure-JAX reference ------------------------------

def lstm_encoder_ref(word_embed, params, nh, nc):
    T, B, ni = word_embed.shape

    def cell(carry, x_t, wih, whh, b):
        h, c = carry
        gates = x_t @ wih + h @ whh + b
        i_g = jax.nn.sigmoid(gates[:, 0 * nh:1 * nh])
        f_g = jax.nn.sigmoid(gates[:, 1 * nh:2 * nh])
        g_g = jnp.tanh(gates[:, 2 * nh:3 * nh])
        o_g = jax.nn.sigmoid(gates[:, 3 * nh:4 * nh])
        c_new = f_g * c + i_g * g_g
        h_new = o_g * jnp.tanh(c_new)
        return (h_new, c_new), h_new

    z = jnp.zeros((B, nh), jnp.float32)
    _, h_fwd = lax.scan(
        functools.partial(cell, wih=params["wih_f"], whh=params["whh_f"], b=params["b_f"]),
        (z, z), word_embed)
    _, h_bwd_rev = lax.scan(
        functools.partial(cell, wih=params["wih_b"], whh=params["whh_b"], b=params["b_b"]),
        (z, z), word_embed[::-1])
    h_bwd = h_bwd_rev[::-1]

    hidden_repr = 0.5 * (h_fwd + h_bwd)      # (T, B, nh)
    hidden_repr = hidden_repr.max(axis=0)    # (B, nh)
    out = hidden_repr @ params["wlin"]
    return out[:, :nc], out[:, nc:]


# ------------------------------ parameter init -------------------------------

def init_params(key, vocab_size, ni, nh, nc):
    ks = jax.random.split(key, 10)
    u = lambda k, shape, s=0.1: jax.random.uniform(k, shape, jnp.float32, -s, s)
    # PyTorch native shapes, then transpose for the kernel's (in, out) matmul layout.
    embed = u(ks[0], (vocab_size, ni))                     # nn.Embedding(vocab_size, ni)
    w_ih_f = u(ks[1], (4 * nh, ni))                        # weight_ih_l0
    w_hh_f = u(ks[2], (4 * nh, nh))                        # weight_hh_l0
    b_ih_f = u(ks[3], (4 * nh,))
    b_hh_f = u(ks[4], (4 * nh,))
    w_ih_b = u(ks[5], (4 * nh, ni))                        # weight_ih_l0_reverse
    w_hh_b = u(ks[6], (4 * nh, nh))                        # weight_hh_l0_reverse
    b_ih_b = u(ks[7], (4 * nh,))
    b_hh_b = u(ks[8], (4 * nh,))
    w_lin = u(ks[9], (2 * nc, nh))                         # nn.Linear(nh, 2*nc, bias=False)

    params = {
        "embed": embed,
        "wih_f": w_ih_f.T, "whh_f": w_hh_f.T, "b_f": (b_ih_f + b_hh_f)[None, :],
        "wih_b": w_ih_b.T, "whh_b": w_hh_b.T, "b_b": (b_ih_b + b_hh_b)[None, :],
        "wlin": w_lin.T,
    }
    return params


# ----------------------------------- main -------------------------------------

if __name__ == "__main__":
    # small shapes: seq=8, batch=2, ni=32, nh=32, nc=8, vocab=100
    seq_len, bsz = 8, 2
    ni, nh, nc, vocab_size = 32, 32, 8, 100

    key = jax.random.PRNGKey(0)
    k_par, k_tok = jax.random.split(key)
    params = init_params(k_par, vocab_size, ni, nh, nc)

    tokens = jax.random.randint(k_tok, (seq_len, bsz), 0, vocab_size, dtype=jnp.int32)

    # embedding lookup (glue, plain JAX gather)
    word_embed = params["embed"][tokens]                   # (T, B, ni)

    mean_ref, logvar_ref = lstm_encoder_ref(word_embed, params, nh, nc)

    # f32 path (matches PyTorch numerics)
    mean, logvar = lstm_encoder_pallas(word_embed, params, nh, nc,
                                       matmul_dtype=jnp.float32)
    jax.block_until_ready((mean, logvar))
    assert mean.shape == (bsz, nc) and logvar.shape == (bsz, nc)
    assert jnp.allclose(mean, mean_ref, atol=1e-4, rtol=1e-4)
    assert jnp.allclose(logvar, logvar_ref, atol=1e-4, rtol=1e-4)

    # bf16 weight/activation path (f32 accumulation + f32 gate math), loose tolerance
    mean_bf, logvar_bf = lstm_encoder_pallas(word_embed, params, nh, nc,
                                             matmul_dtype=jnp.bfloat16)
    jax.block_until_ready((mean_bf, logvar_bf))
    assert jnp.allclose(mean_bf, mean_ref, atol=5e-2)
    assert jnp.allclose(logvar_bf, logvar_ref, atol=5e-2)

    print("KERNEL_OK")
</pallas_src>

<mosaic_0001>
module attributes {stable_mosaic.version = 11 : i64} {
  func.func @_lstm_encoder_kernel(%arg0: memref<64x32xf32, #tpu.memory_space<vmem>>, %arg1: memref<32x128xf32, #tpu.memory_space<vmem>>, %arg2: memref<32x128xf32, #tpu.memory_space<vmem>>, %arg3: memref<1x128xf32, #tpu.memory_space<vmem>>, %arg4: memref<32x128xf32, #tpu.memory_space<vmem>>, %arg5: memref<32x128xf32, #tpu.memory_space<vmem>>, %arg6: memref<1x128xf32, #tpu.memory_space<vmem>>, %arg7: memref<32x128xf32, #tpu.memory_space<vmem>>, %arg8: memref<8x128xf32, #tpu.memory_space<vmem>>, %arg9: memref<64x128xf32, #tpu.memory_space<vmem>>, %arg10: memref<64x128xf32, #tpu.memory_space<vmem>>, %arg11: memref<8x8x32xf32, #tpu.memory_space<vmem>>, %arg12: memref<8x8x32xf32, #tpu.memory_space<vmem>>) attributes {dimension_semantics = [], scalar_prefetch = 0 : i64, scratch_operands = 4 : i64, tpu.core_type = #tpu.core_type<tc>} {
    %c0 = arith.constant 0 : index
    %c0_0 = arith.constant 0 : index
    %0 = vector.load %arg0[%c0, %c0_0] : memref<64x32xf32, #tpu.memory_space<vmem>>, vector<64x32xf32>
    %c0_1 = arith.constant 0 : index
    %c0_2 = arith.constant 0 : index
    %1 = vector.load %arg1[%c0_1, %c0_2] : memref<32x128xf32, #tpu.memory_space<vmem>>, vector<32x128xf32>
    %cst = arith.constant dense<0.000000e+00> : vector<64x128xf32>
    %2 = tpu.matmul %0, %1, %cst {dimension_numbers = #tpu.dot_dimension_numbers<[1], [0], [0], [1], [0, 0, 1, 1], [], []>} : vector<64x32xf32>, vector<32x128xf32>, vector<64x128xf32> -> vector<64x128xf32>
    %c0_3 = arith.constant 0 : index
    %c0_4 = arith.constant 0 : index
    %3 = vector.load %arg3[%c0_3, %c0_4] : memref<1x128xf32, #tpu.memory_space<vmem>>, vector<1x128xf32>
    %4 = vector.broadcast %3 : vector<1x128xf32> to vector<64x128xf32>
    %5 = arith.addf %2, %4 : vector<64x128xf32>
    %c0_5 = arith.constant 0 : index
    %c0_6 = arith.constant 0 : index
    %6 = vector.load %arg9[%c0_5, %c0_6] : memref<64x128xf32, #tpu.memory_space<vmem>>, vector<64x128xf32>
    tpu.vector_store %arg9[%c0_5, %c0_6], %5 {strides = array<i32>} : memref<64x128xf32, #tpu.memory_space<vmem>>, vector<64x128xf32>,
    %c0_7 = arith.constant 0 : index
    %c0_8 = arith.constant 0 : index
    %7 = vector.load %arg4[%c0_7, %c0_8] : memref<32x128xf32, #tpu.memory_space<vmem>>, vector<32x128xf32>
    %cst_9 = arith.constant dense<0.000000e+00> : vector<64x128xf32>
    %8 = tpu.matmul %0, %7, %cst_9 {dimension_numbers = #tpu.dot_dimension_numbers<[1], [0], [0], [1], [0, 0, 1, 1], [], []>} : vector<64x32xf32>, vector<32x128xf32>, vector<64x128xf32> -> vector<64x128xf32>
    %c0_10 = arith.constant 0 : index
    %c0_11 = arith.constant 0 : index
    %9 = vector.load %arg6[%c0_10, %c0_11] : memref<1x128xf32, #tpu.memory_space<vmem>>, vector<1x128xf32>
    %10 = vector.broadcast %9 : vector<1x128xf32> to vector<64x128xf32>
    %11 = arith.addf %8, %10 : vector<64x128xf32>
    %c0_12 = arith.constant 0 : index
    %c0_13 = arith.constant 0 : index
    %12 = vector.load %arg10[%c0_12, %c0_13] : memref<64x128xf32, #tpu.memory_space<vmem>>, vector<64x128xf32>
    tpu.vector_store %arg10[%c0_12, %c0_13], %11 {strides = array<i32>} : memref<64x128xf32, #tpu.memory_space<vmem>>, vector<64x128xf32>,
    %cst_14 = arith.constant 0.000000e+00 : f32
    %13 = vector.broadcast %cst_14 : f32 to vector<8x32xf32>
    %c0_i32 = arith.constant 0 : i32
    %c8_i32 = arith.constant 8 : i32
    %14 = arith.muli %c0_i32, %c8_i32 : i32
    %15 = tpu.assume_multiple %14, 8 : i32
    %c7_i32 = arith.constant 7 : i32
    %16 = arith.subi %c7_i32, %c0_i32 : i32
    %c8_i32_15 = arith.constant 8 : i32
    %17 = arith.muli %16, %c8_i32_15 : i32
    %18 = tpu.assume_multiple %17, 8 : i32
    %19 = arith.index_cast %15 : i32 to index
    %c0_16 = arith.constant 0 : index
    %20 = vector.load %arg9[%19, %c0_16] : memref<64x128xf32, #tpu.memory_space<vmem>>, vector<8x128xf32>
    %c0_17 = arith.constant 0 : index
    %c0_18 = arith.constant 0 : index
    %21 = vector.load %arg2[%c0_17, %c0_18] : memref<32x128xf32, #tpu.memory_space<vmem>>, vector<32x128xf32>
    %cst_19 = arith.constant dense<0.000000e+00> : vector<8x128xf32>
    %22 = tpu.matmul %13, %21, %cst_19 {dimension_numbers = #tpu.dot_dimension_numbers<[1], [0], [0], [1], [0, 0, 1, 1], [], []>} : vector<8x32xf32>, vector<32x128xf32>, vector<8x128xf32> -> vector<8x128xf32>
    %23 = arith.addf %20, %22 : vector<8x128xf32>
    %24 = vector.extract_strided_slice %23 {offsets = [0, 0], sizes = [8, 32], strides = [1, 1]} : vector<8x128xf32> to vector<8x32xf32>
    %25 = arith.negf %24 : vector<8x32xf32>
    %26 = math.exp %25 : vector<8x32xf32>
    %cst_20 = arith.constant 1.000000e+00 : f32
    %27 = vector.broadcast %cst_20 : f32 to vector<8x32xf32>
    %28 = arith.addf %27, %26 : vector<8x32xf32>
    %29 = arith.divf %27, %28 : vector<8x32xf32>
    %30 = vector.extract_strided_slice %23 {offsets = [0, 32], sizes = [8, 32], strides = [1, 1]} : vector<8x128xf32> to vector<8x32xf32>
    %31 = arith.negf %30 : vector<8x32xf32>
    %32 = math.exp %31 : vector<8x32xf32>
    %cst_21 = arith.constant 1.000000e+00 : f32
    %33 = vector.broadcast %cst_21 : f32 to vector<8x32xf32>
    %34 = arith.addf %33, %32 : vector<8x32xf32>
    %35 = arith.divf %33, %34 : vector<8x32xf32>
    %36 = vector.extract_strided_slice %23 {offsets = [0, 64], sizes = [8, 32], strides = [1, 1]} : vector<8x128xf32> to vector<8x32xf32>
    %37 = math.tanh %36 : vector<8x32xf32>
    %38 = vector.extract_strided_slice %23 {offsets = [0, 96], sizes = [8, 32], strides = [1, 1]} : vector<8x128xf32> to vector<8x32xf32>
    %39 = arith.negf %38 : vector<8x32xf32>
    %40 = math.exp %39 : vector<8x32xf32>
    %cst_22 = arith.constant 1.000000e+00 : f32
    %41 = vector.broadcast %cst_22 : f32 to vector<8x32xf32>
    %42 = arith.addf %41, %40 : vector<8x32xf32>
    %43 = arith.divf %41, %42 : vector<8x32xf32>
    %44 = arith.mulf %35, %13 : vector<8x32xf32>
    %45 = arith.mulf %29, %37 : vector<8x32xf32>
    %46 = arith.addf %44, %45 : vector<8x32xf32>
    %47 = math.tanh %46 : vector<8x32xf32>
    %48 = arith.mulf %43, %47 : vector<8x32xf32>
    %49 = arith.index_cast %18 : i32 to index
    %c0_23 = arith.constant 0 : index
    %50 = vector.load %arg10[%49, %c0_23] : memref<64x128xf32, #tpu.memory_space<vmem>>, vector<8x128xf32>
    %c0_24 = arith.constant 0 : index
    %c0_25 = arith.constant 0 : index
    %51 = vector.load %arg5[%c0_24, %c0_25] : memref<32x128xf32, #tpu.memory_space<vmem>>, vector<32x128xf32>
    %cst_26 = arith.constant dense<0.000000e+00> : vector<8x128xf32>
    %52 = tpu.matmul %13, %51, %cst_26 {dimension_numbers = #tpu.dot_dimension_numbers<[1], [0], [0], [1], [0, 0, 1, 1], [], []>} : vector<8x32xf32>, vector<32x128xf32>, vector<8x128xf32> -> vector<8x128xf32>
    %53 = arith.addf %50, %52 : vector<8x128xf32>
    %54 = vector.extract_strided_slice %53 {offsets = [0, 0], sizes = [8, 32], strides = [1, 1]} : vector<8x128xf32> to vector<8x32xf32>
    %55 = arith.negf %54 : vector<8x32xf32>
    %56 = math.exp %55 : vector<8x32xf32>
    %cst_27 = arith.constant 1.000000e+00 : f32
    %57 = vector.broadcast %cst_27 : f32 to vector<8x32xf32>
    %58 = arith.addf %57, %56 : vector<8x32xf32>
    %59 = arith.divf %57, %58 : vector<8x32xf32>
    %60 = vector.extract_strided_slice %53 {offsets = [0, 32], sizes = [8, 32], strides = [1, 1]} : vector<8x128xf32> to vector<8x32xf32>
    %61 = arith.negf %60 : vector<8x32xf32>
    %62 = math.exp %61 : vector<8x32xf32>
    %cst_28 = arith.constant 1.000000e+00 : f32
    %63 = vector.broadcast %cst_28 : f32 to vector<8x32xf32>
    %64 = arith.addf %63, %62 : vector<8x32xf32>
    %65 = arith.divf %63, %64 : vector<8x32xf32>
    %66 = vector.extract_strided_slice %53 {offsets = [0, 64], sizes = [8, 32], strides = [1, 1]} : vector<8x128xf32> to vector<8x32xf32>
    %67 = math.tanh %66 : vector<8x32xf32>
    %68 = vector.extract_strided_slice %53 {offsets = [0, 96], sizes = [8, 32], strides = [1, 1]} : vector<8x128xf32> to vector<8x32xf32>
    %69 = arith.negf %68 : vector<8x32xf32>
    %70 = math.exp %69 : vector<8x32xf32>
    %cst_29 = arith.constant 1.000000e+00 : f32
    %71 = vector.broadcast %cst_29 : f32 to vector<8x32xf32>
    %72 = arith.addf %71, %70 : vector<8x32xf32>
    %73 = arith.divf %71, %72 : vector<8x32xf32>
    %74 = arith.mulf %65, %13 : vector<8x32xf32>
    %75 = arith.mulf %59, %67 : vector<8x32xf32>
    %76 = arith.addf %74, %75 : vector<8x32xf32>
    %77 = math.tanh %76 : vector<8x32xf32>
    %78 = arith.mulf %73, %77 : vector<8x32xf32>
    %79 = arith.index_cast %c0_i32 : i32 to index
    %c0_30 = arith.constant 0 : index
    %c0_31 = arith.constant 0 : index
    %80 = vector.load %arg11[%79, %c0_30, %c0_31] : memref<8x8x32xf32, #tpu.memory_space<vmem>>, vector<1x8x32xf32>
    %81 = vector.shape_cast %80 : vector<1x8x32xf32> to vector<8x32xf32>
    %82 = vector.shape_cast %48 : vector<8x32xf32> to vector<1x8x32xf32>
    tpu.vector_store %arg11[%79, %c0_30, %c0_31], %82 {strides = array<i32>} : memref<8x8x32xf32, #tpu.memory_space<vmem>>, vector<1x8x32xf32>,
    %c7_i32_32 = arith.constant 7 : i32
    %83 = arith.subi %c7_i32_32, %c0_i32 : i32
    %84 = arith.index_cast %83 : i32 to index
    %c0_33 = arith.constant 0 : index
    %c0_34 = arith.constant 0 : index
    %85 = vector.load %arg12[%84, %c0_33, %c0_34] : memref<8x8x32xf32, #tpu.memory_space<vmem>>, vector<1x8x32xf32>
    %86 = vector.shape_cast %85 : vector<1x8x32xf32> to vector<8x32xf32>
    %87 = vector.shape_cast %78 : vector<8x32xf32> to vector<1x8x32xf32>
    tpu.vector_store %arg12[%84, %c0_33, %c0_34], %87 {strides = array<i32>} : memref<8x8x32xf32, #tpu.memory_space<vmem>>, vector<1x8x32xf32>,
    %c1_i32 = arith.constant 1 : i32
    %c8_i32_35 = arith.constant 8 : i32
    %88 = arith.muli %c1_i32, %c8_i32_35 : i32
    %89 = tpu.assume_multiple %88, 8 : i32
    %c7_i32_36 = arith.constant 7 : i32
    %90 = arith.subi %c7_i32_36, %c1_i32 : i32
    %c8_i32_37 = arith.constant 8 : i32
    %91 = arith.muli %90, %c8_i32_37 : i32
    %92 = tpu.assume_multiple %91, 8 : i32
    %93 = arith.index_cast %89 : i32 to index
    %c0_38 = arith.constant 0 : index
    %94 = vector.load %arg9[%93, %c0_38] : memref<64x128xf32, #tpu.memory_space<vmem>>, vector<8x128xf32>
    %c0_39 = arith.constant 0 : index
    %c0_40 = arith.constant 0 : index
    %95 = vector.load %arg2[%c0_39, %c0_40] : memref<32x128xf32, #tpu.memory_space<vmem>>, vector<32x128xf32>
    %cst_41 = arith.constant dense<0.000000e+00> : vector<8x128xf32>
    %96 = tpu.matmul %48, %95, %cst_41 {dimension_numbers = #tpu.dot_dimension_numbers<[1], [0], [0], [1], [0, 0, 1, 1], [], []>} : vector<8x32xf32>, vector<32x128xf32>, vector<8x128xf32> -> vector<8x128xf32>
    %97 = arith.addf %94, %96 : vector<8x128xf32>
    %98 = vector.extract_strided_slice %97 {offsets = [0, 0], sizes = [8, 32], strides = [1, 1]} : vector<8x128xf32> to vector<8x32xf32>
    %99 = arith.negf %98 : vector<8x32xf32>
    %100 = math.exp %99 : vector<8x32xf32>
    %cst_42 = arith.constant 1.000000e+00 : f32
    %101 = vector.broadcast %cst_42 : f32 to vector<8x32xf32>
    %102 = arith.addf %101, %100 : vector<8x32xf32>
    %103 = arith.divf %101, %102 : vector<8x32xf32>
    %104 = vector.extract_strided_slice %97 {offsets = [0, 32], sizes = [8, 32], strides = [1, 1]} : vector<8x128xf32> to vector<8x32xf32>
    %105 = arith.negf %104 : vector<8x32xf32>
    %106 = math.exp %105 : vector<8x32xf32>
    %cst_43 = arith.constant 1.000000e+00 : f32
    %107 = vector.broadcast %cst_43 : f32 to vector<8x32xf32>
    %108 = arith.addf %107, %106 : vector<8x32xf32>
    %109 = arith.divf %107, %108 : vector<8x32xf32>
    %110 = vector.extract_strided_slice %97 {offsets = [0, 64], sizes = [8, 32], strides = [1, 1]} : vector<8x128xf32> to vector<8x32xf32>
    %111 = math.tanh %110 : vector<8x32xf32>
    %112 = vector.extract_strided_slice %97 {offsets = [0, 96], sizes = [8, 32], strides = [1, 1]} : vector<8x128xf32> to vector<8x32xf32>
    %113 = arith.negf %112 : vector<8x32xf32>
    %114 = math.exp %113 : vector<8x32xf32>
    %cst_44 = arith.constant 1.000000e+00 : f32
    %115 = vector.broadcast %cst_44 : f32 to vector<8x32xf32>
    %116 = arith.addf %115, %114 : vector<8x32xf32>
    %117 = arith.divf %115, %116 : vector<8x32xf32>
    %118 = arith.mulf %109, %46 : vector<8x32xf32>
    %119 = arith.mulf %103, %111 : vector<8x32xf32>
    %120 = arith.addf %118, %119 : vector<8x32xf32>
    %121 = math.tanh %120 : vector<8x32xf32>
    %122 = arith.mulf %117, %121 : vector<8x32xf32>
    %123 = arith.index_cast %92 : i32 to index
    %c0_45 = arith.constant 0 : index
    %124 = vector.load %arg10[%123, %c0_45] : memref<64x128xf32, #tpu.memory_space<vmem>>, vector<8x128xf32>
    %c0_46 = arith.constant 0 : index
    %c0_47 = arith.constant 0 : index
    %125 = vector.load %arg5[%c0_46, %c0_47] : memref<32x128xf32, #tpu.memory_space<vmem>>, vector<32x128xf32>
    %cst_48 = arith.constant dense<0.000000e+00> : vector<8x128xf32>
    %126 = tpu.matmul %78, %125, %cst_48 {dimension_numbers = #tpu.dot_dimension_numbers<[1], [0], [0], [1], [0, 0, 1, 1], [], []>} : vector<8x32xf32>, vector<32x128xf32>, vector<8x128xf32> -> vector<8x128xf32>
    %127 = arith.addf %124, %126 : vector<8x128xf32>
    %128 = vector.extract_strided_slice %127 {offsets = [0, 0], sizes = [8, 32], strides = [1, 1]} : vector<8x128xf32> to vector<8x32xf32>
    %129 = arith.negf %128 : vector<8x32xf32>
    %130 = math.exp %129 : vector<8x32xf32>
    %cst_49 = arith.constant 1.000000e+00 : f32
    %131 = vector.broadcast %cst_49 : f32 to vector<8x32xf32>
    %132 = arith.addf %131, %130 : vector<8x32xf32>
    %133 = arith.divf %131, %132 : vector<8x32xf32>
    %134 = vector.extract_strided_slice %127 {offsets = [0, 32], sizes = [8, 32], strides = [1, 1]} : vector<8x128xf32> to vector<8x32xf32>
    %135 = arith.negf %134 : vector<8x32xf32>
    %136 = math.exp %135 : vector<8x32xf32>
    %cst_50 = arith.constant 1.000000e+00 : f32
    %137 = vector.broadcast %cst_50 : f32 to vector<8x32xf32>
    %138 = arith.addf %137, %136 : vector<8x32xf32>
    %139 = arith.divf %137, %138 : vector<8x32xf32>
    %140 = vector.extract_strided_slice %127 {offsets = [0, 64], sizes = [8, 32], strides = [1, 1]} : vector<8x128xf32> to vector<8x32xf32>
    %141 = math.tanh %140 : vector<8x32xf32>
    %142 = vector.extract_strided_slice %127 {offsets = [0, 96], sizes = [8, 32], strides = [1, 1]} : vector<8x128xf32> to vector<8x32xf32>
    %143 = arith.negf %142 : vector<8x32xf32>
    %144 = math.exp %143 : vector<8x32xf32>
    %cst_51 = arith.constant 1.000000e+00 : f32
    %145 = vector.broadcast %cst_51 : f32 to vector<8x32xf32>
    %146 = arith.addf %145, %144 : vector<8x32xf32>
    %147 = arith.divf %145, %146 : vector<8x32xf32>
    %148 = arith.mulf %139, %76 : vector<8x32xf32>
    %149 = arith.mulf %133, %141 : vector<8x32xf32>
    %150 = arith.addf %148, %149 : vector<8x32xf32>
    %151 = math.tanh %150 : vector<8x32xf32>
    %152 = arith.mulf %147, %151 : vector<8x32xf32>
    %153 = arith.index_cast %c1_i32 : i32 to index
    %c0_52 = arith.constant 0 : index
    %c0_53 = arith.constant 0 : index
    %154 = vector.load %arg11[%153, %c0_52, %c0_53] : memref<8x8x32xf32, #tpu.memory_space<vmem>>, vector<1x8x32xf32>
    %155 = vector.shape_cast %154 : vector<1x8x32xf32> to vector<8x32xf32>
    %156 = vector.shape_cast %122 : vector<8x32xf32> to vector<1x8x32xf32>
    tpu.vector_store %arg11[%153, %c0_52, %c0_53], %156 {strides = array<i32>} : memref<8x8x32xf32, #tpu.memory_space<vmem>>, vector<1x8x32xf32>,
    %c7_i32_54 = arith.constant 7 : i32
    %157 = arith.subi %c7_i32_54, %c1_i32 : i32
    %158 = arith.index_cast %157 : i32 to index
    %c0_55 = arith.constant 0 : index
    %c0_56 = arith.constant 0 : index
    %159 = vector.load %arg12[%158, %c0_55, %c0_56] : memref<8x8x32xf32, #tpu.memory_space<vmem>>, vector<1x8x32xf32>
    %160 = vector.shape_cast %159 : vector<1x8x32xf32> to vector<8x32xf32>
    %161 = vector.shape_cast %152 : vector<8x32xf32> to vector<1x8x32xf32>
    tpu.vector_store %arg12[%158, %c0_55, %c0_56], %161 {strides = array<i32>} : memref<8x8x32xf32, #tpu.memory_space<vmem>>, vector<1x8x32xf32>,
    %c2_i32 = arith.constant 2 : i32
    %c8_i32_57 = arith.constant 8 : i32
    %162 = arith.muli %c2_i32, %c8_i32_57 : i32
    %163 = tpu.assume_multiple %162, 8 : i32
    %c7_i32_58 = arith.constant 7 : i32
    %164 = arith.subi %c7_i32_58, %c2_i32 : i32
    %c8_i32_59 = arith.constant 8 : i32
    %165 = arith.muli %164, %c8_i32_59 : i32
    %166 = tpu.assume_multiple %165, 8 : i32
    %167 = arith.index_cast %163 : i32 to index
    %c0_60 = arith.constant 0 : index
    %168 = vector.load %arg9[%167, %c0_60] : memref<64x128xf32, #tpu.memory_space<vmem>>, vector<8x128xf32>
    %c0_61 = arith.constant 0 : index
    %c0_62 = arith.constant 0 : index
    %169 = vector.load %arg2[%c0_61, %c0_62] : memref<32x128xf32, #tpu.memory_space<vmem>>, vector<32x128xf32>
    %cst_63 = arith.constant dense<0.000000e+00> : vector<8x128xf32>
    %170 = tpu.matmul %122, %169, %cst_63 {dimension_numbers = #tpu.dot_dimension_numbers<[1], [0], [0], [1], [0, 0, 1, 1], [], []>} : vector<8x32xf32>, vector<32x128xf32>, vector<8x128xf32> -> vector<8x128xf32>
    %171 = arith.addf %168, %170 : vector<8x128xf32>
    %172 = vector.extract_strided_slice %171 {offsets = [0, 0], sizes = [8, 32], strides = [1, 1]} : vector<8x128xf32> to vector<8x32xf32>
    %173 = arith.negf %172 : vector<8x32xf32>
    %174 = math.exp %173 : vector<8x32xf32>
    %cst_64 = arith.constant 1.000000e+00 : f32
    %175 = vector.broadcast %cst_64 : f32 to vector<8x32xf32>
    %176 = arith.addf %175, %174 : vector<8x32xf32>
    %177 = arith.divf %175, %176 : vector<8x32xf32>
    %178 = vector.extract_strided_slice %171 {offsets = [0, 32], sizes = [8, 32], strides = [1, 1]} : vector<8x128xf32> to vector<8x32xf32>
    %179 = arith.negf %178 : vector<8x32xf32>
    %180 = math.exp %179 : vector<8x32xf32>
    %cst_65 = arith.constant 1.000000e+00 : f32
    %181 = vector.broadcast %cst_65 : f32 to vector<8x32xf32>
    %182 = arith.addf %181, %180 : vector<8x32xf32>
    %183 = arith.divf %181, %182 : vector<8x32xf32>
    %184 = vector.extract_strided_slice %171 {offsets = [0, 64], sizes = [8, 32], strides = [1, 1]} : vector<8x128xf32> to vector<8x32xf32>
    %185 = math.tanh %184 : vector<8x32xf32>
    %186 = vector.extract_strided_slice %171 {offsets = [0, 96], sizes = [8, 32], strides = [1, 1]} : vector<8x128xf32> to vector<8x32xf32>
    %187 = arith.negf %186 : vector<8x32xf32>
    %188 = math.exp %187 : vector<8x32xf32>
    %cst_66 = arith.constant 1.000000e+00 : f32
    %189 = vector.broadcast %cst_66 : f32 to vector<8x32xf32>
    %190 = arith.addf %189, %188 : vector<8x32xf32>
    %191 = arith.divf %189, %190 : vector<8x32xf32>
    %192 = arith.mulf %183, %120 : vector<8x32xf32>
    %193 = arith.mulf %177, %185 : vector<8x32xf32>
    %194 = arith.addf %192, %193 : vector<8x32xf32>
    %195 = math.tanh %194 : vector<8x32xf32>
    %196 = arith.mulf %191, %195 : vector<8x32xf32>
    %197 = arith.index_cast %166 : i32 to index
    %c0_67 = arith.constant 0 : index
    %198 = vector.load %arg10[%197, %c0_67] : memref<64x128xf32, #tpu.memory_space<vmem>>, vector<8x128xf32>
    %c0_68 = arith.constant 0 : index
    %c0_69 = arith.constant 0 : index
    %199 = vector.load %arg5[%c0_68, %c0_69] : memref<32x128xf32, #tpu.memory_space<vmem>>, vector<32x128xf32>
    %cst_70 = arith.constant dense<0.000000e+00> : vector<8x128xf32>
    %200 = tpu.matmul %152, %199, %cst_70 {dimension_numbers = #tpu.dot_dimension_numbers<[1], [0], [0], [1], [0, 0, 1, 1], [], []>} : vector<8x32xf32>, vector<32x128xf32>, vector<8x128xf32> -> vector<8x128xf32>
    %201 = arith.addf %198, %200 : vector<8x128xf32>
    %202 = vector.extract_strided_slice %201 {offsets = [0, 0], sizes = [8, 32], strides = [1, 1]} : vector<8x128xf32> to vector<8x32xf32>
    %203 = arith.negf %202 : vector<8x32xf32>
    %204 = math.exp %203 : vector<8x32xf32>
    %cst_71 = arith.constant 1.000000e+00 : f32
    %205 = vector.broadcast %cst_71 : f32 to vector<8x32xf32>
    %206 = arith.addf %205, %204 : vector<8x32xf32>
    %207 = arith.divf %205, %206 : vector<8x32xf32>
    %208 = vector.extract_strided_slice %201 {offsets = [0, 32], sizes = [8, 32], strides = [1, 1]} : vector<8x128xf32> to vector<8x32xf32>
    %209 = arith.negf %208 : vector<8x32xf32>
    %210 = math.exp %209 : vector<8x32xf32>
    %cst_72 = arith.constant 1.000000e+00 : f32
    %211 = vector.broadcast %cst_72 : f32 to vector<8x32xf32>
    %212 = arith.addf %211, %210 : vector<8x32xf32>
    %213 = arith.divf %211, %212 : vector<8x32xf32>
    %214 = vector.extract_strided_slice %201 {offsets = [0, 64], sizes = [8, 32], strides = [1, 1]} : vector<8x128xf32> to vector<8x32xf32>
    %215 = math.tanh %214 : vector<8x32xf32>
    %216 = vector.extract_strided_slice %201 {offsets = [0, 96], sizes = [8, 32], strides = [1, 1]} : vector<8x128xf32> to vector<8x32xf32>
    %217 = arith.negf %216 : vector<8x32xf32>
    %218 = math.exp %217 : vector<8x32xf32>
    %cst_73 = arith.constant 1.000000e+00 : f32
    %219 = vector.broadcast %cst_73 : f32 to vector<8x32xf32>
    %220 = arith.addf %219, %218 : vector<8x32xf32>
    %221 = arith.divf %219, %220 : vector<8x32xf32>
    %222 = arith.mulf %213, %150 : vector<8x32xf32>
    %223 = arith.mulf %207, %215 : vector<8x32xf32>
    %224 = arith.addf %222, %223 : vector<8x32xf32>
    %225 = math.tanh %224 : vector<8x32xf32>
    %226 = arith.mulf %221, %225 : vector<8x32xf32>
    %227 = arith.index_cast %c2_i32 : i32 to index
    %c0_74 = arith.constant 0 : index
    %c0_75 = arith.constant 0 : index
    %228 = vector.load %arg11[%227, %c0_74, %c0_75] : memref<8x8x32xf32, #tpu.memory_space<vmem>>, vector<1x8x32xf32>
    %229 = vector.shape_cast %228 : vector<1x8x32xf32> to vector<8x32xf32>
    %230 = vector.shape_cast %196 : vector<8x32xf32> to vector<1x8x32xf32>
    tpu.vector_store %arg11[%227, %c0_74, %c0_75], %230 {strides = array<i32>} : memref<8x8x32xf32, #tpu.memory_space<vmem>>, vector<1x8x32xf32>,
    %c7_i32_76 = arith.constant 7 : i32
    %231 = arith.subi %c7_i32_76, %c2_i32 : i32
    %232 = arith.index_cast %231 : i32 to index
    %c0_77 = arith.constant 0 : index
    %c0_78 = arith.constant 0 : index
    %233 = vector.load %arg12[%232, %c0_77, %c0_78] : memref<8x8x32xf32, #tpu.memory_space<vmem>>, vector<1x8x32xf32>
    %234 = vector.shape_cast %233 : vector<1x8x32xf32> to vector<8x32xf32>
    %235 = vector.shape_cast %226 : vector<8x32xf32> to vector<1x8x32xf32>
    tpu.vector_store %arg12[%232, %c0_77, %c0_78], %235 {strides = array<i32>} : memref<8x8x32xf32, #tpu.memory_space<vmem>>, vector<1x8x32xf32>,
    %c3_i32 = arith.constant 3 : i32
    %c8_i32_79 = arith.constant 8 : i32
    %236 = arith.muli %c3_i32, %c8_i32_79 : i32
    %237 = tpu.assume_multiple %236, 8 : i32
    %c7_i32_80 = arith.constant 7 : i32
    %238 = arith.subi %c7_i32_80, %c3_i32 : i32
    %c8_i32_81 = arith.constant 8 : i32
    %239 = arith.muli %238, %c8_i32_81 : i32
    %240 = tpu.assume_multiple %239, 8 : i32
    %241 = arith.index_cast %237 : i32 to index
    %c0_82 = arith.constant 0 : index
    %242 = vector.load %arg9[%241, %c0_82] : memref<64x128xf32, #tpu.memory_space<vmem>>, vector<8x128xf32>
    %c0_83 = arith.constant 0 : index
    %c0_84 = arith.constant 0 : index
    %243 = vector.load %arg2[%c0_83, %c0_84] : memref<32x128xf32, #tpu.memory_space<vmem>>, vector<32x128xf32>
    %cst_85 = arith.constant dense<0.000000e+00> : vector<8x128xf32>
    %244 = tpu.matmul %196, %243, %cst_85 {dimension_numbers = #tpu.dot_dimension_numbers<[1], [0], [0], [1], [0, 0, 1, 1], [], []>} : vector<8x32xf32>, vector<32x128xf32>, vector<8x128xf32> -> vector<8x128xf32>
    %245 = arith.addf %242, %244 : vector<8x128xf32>
    %246 = vector.extract_strided_slice %245 {offsets = [0, 0], sizes = [8, 32], strides = [1, 1]} : vector<8x128xf32> to vector<8x32xf32>
    %247 = arith.negf %246 : vector<8x32xf32>
    %248 = math.exp %247 : vector<8x32xf32>
    %cst_86 = arith.constant 1.000000e+00 : f32
    %249 = vector.broadcast %cst_86 : f32 to vector<8x32xf32>
    %250 = arith.addf %249, %248 : vector<8x32xf32>
    %251 = arith.divf %249, %250 : vector<8x32xf32>
    %252 = vector.extract_strided_slice %245 {offsets = [0, 32], sizes = [8, 32], strides = [1, 1]} : vector<8x128xf32> to vector<8x32xf32>
    %253 = arith.negf %252 : vector<8x32xf32>
    %254 = math.exp %253 : vector<8x32xf32>
    %cst_87 = arith.constant 1.000000e+00 : f32
    %255 = vector.broadcast %cst_87 : f32 to vector<8x32xf32>
    %256 = arith.addf %255, %254 : vector<8x32xf32>
    %257 = arith.divf %255, %256 : vector<8x32xf32>
    %258 = vector.extract_strided_slice %245 {offsets = [0, 64], sizes = [8, 32], strides = [1, 1]} : vector<8x128xf32> to vector<8x32xf32>
    %259 = math.tanh %258 : vector<8x32xf32>
    %260 = vector.extract_strided_slice %245 {offsets = [0, 96], sizes = [8, 32], strides = [1, 1]} : vector<8x128xf32> to vector<8x32xf32>
    %261 = arith.negf %260 : vector<8x32xf32>
    %262 = math.exp %261 : vector<8x32xf32>
    %cst_88 = arith.constant 1.000000e+00 : f32
    %263 = vector.broadcast %cst_88 : f32 to vector<8x32xf32>
    %264 = arith.addf %263, %262 : vector<8x32xf32>
    %265 = arith.divf %263, %264 : vector<8x32xf32>
    %266 = arith.mulf %257, %194 : vector<8x32xf32>
    %267 = arith.mulf %251, %259 : vector<8x32xf32>
    %268 = arith.addf %266, %267 : vector<8x32xf32>
    %269 = math.tanh %268 : vector<8x32xf32>
    %270 = arith.mulf %265, %269 : vector<8x32xf32>
    %271 = arith.index_cast %240 : i32 to index
    %c0_89 = arith.constant 0 : index
    %272 = vector.load %arg10[%271, %c0_89] : memref<64x128xf32, #tpu.memory_space<vmem>>, vector<8x128xf32>
    %c0_90 = arith.constant 0 : index
    %c0_91 = arith.constant 0 : index
    %273 = vector.load %arg5[%c0_90, %c0_91] : memref<32x128xf32, #tpu.memory_space<vmem>>, vector<32x128xf32>
    %cst_92 = arith.constant dense<0.000000e+00> : vector<8x128xf32>
    %274 = tpu.matmul %226, %273, %cst_92 {dimension_numbers = #tpu.dot_dimension_numbers<[1], [0], [0], [1], [0, 0, 1, 1], [], []>} : vector<8x32xf32>, vector<32x128xf32>, vector<8x128xf32> -> vector<8x128xf32>
    %275 = arith.addf %272, %274 : vector<8x128xf32>
    %276 = vector.extract_strided_slice %275 {offsets = [0, 0], sizes = [8, 32], strides = [1, 1]} : vector<8x128xf32> to vector<8x32xf32>
    %277 = arith.negf %276 : vector<8x32xf32>
    %278 = math.exp %277 : vector<8x32xf32>
    %cst_93 = arith.constant 1.000000e+00 : f32
    %279 = vector.broadcast %cst_93 : f32 to vector<8x32xf32>
    %280 = arith.addf %279, %278 : vector<8x32xf32>
    %281 = arith.divf %279, %280 : vector<8x32xf32>
    %282 = vector.extract_strided_slice %275 {offsets = [0, 32], sizes = [8, 32], strides = [1, 1]} : vector<8x128xf32> to vector<8x32xf32>
    %283 = arith.negf %282 : vector<8x32xf32>
    %284 = math.exp %283 : vector<8x32xf32>
    %cst_94 = arith.constant 1.000000e+00 : f32
    %285 = vector.broadcast %cst_94 : f32 to vector<8x32xf32>
    %286 = arith.addf %285, %284 : vector<8x32xf32>
    %287 = arith.divf %285, %286 : vector<8x32xf32>
    %288 = vector.extract_strided_slice %275 {offsets = [0, 64], sizes = [8, 32], strides = [1, 1]} : vector<8x128xf32> to vector<8x32xf32>
    %289 = math.tanh %288 : vector<8x32xf32>
    %290 = vector.extract_strided_slice %275 {offsets = [0, 96], sizes = [8, 32], strides = [1, 1]} : vector<8x128xf32> to vector<8x32xf32>
    %291 = arith.negf %290 : vector<8x32xf32>
    %292 = math.exp %291 : vector<8x32xf32>
    %cst_95 = arith.constant 1.000000e+00 : f32
    %293 = vector.broadcast %cst_95 : f32 to vector<8x32xf32>
    %294 = arith.addf %293, %292 : vector<8x32xf32>
    %295 = arith.divf %293, %294 : vector<8x32xf32>
    %296 = arith.mulf %287, %224 : vector<8x32xf32>
    %297 = arith.mulf %281, %289 : vector<8x32xf32>
    %298 = arith.addf %296, %297 : vector<8x32xf32>
    %299 = math.tanh %298 : vector<8x32xf32>
    %300 = arith.mulf %295, %299 : vector<8x32xf32>
    %301 = arith.index_cast %c3_i32 : i32 to index
    %c0_96 = arith.constant 0 : index
    %c0_97 = arith.constant 0 : index
    %302 = vector.load %arg11[%301, %c0_96, %c0_97] : memref<8x8x32xf32, #tpu.memory_space<vmem>>, vector<1x8x32xf32>
    %303 = vector.shape_cast %302 : vector<1x8x32xf32> to vector<8x32xf32>
    %304 = vector.shape_cast %270 : vector<8x32xf32> to vector<1x8x32xf32>
    tpu.vector_store %arg11[%301, %c0_96, %c0_97], %304 {strides = array<i32>} : memref<8x8x32xf32, #tpu.memory_space<vmem>>, vector<1x8x32xf32>,
    %c7_i32_98 = arith.constant 7 : i32
    %305 = arith.subi %c7_i32_98, %c3_i32 : i32
    %306 = arith.index_cast %305 : i32 to index
    %c0_99 = arith.constant 0 : index
    %c0_100 = arith.constant 0 : index
    %307 = vector.load %arg12[%306, %c0_99, %c0_100] : memref<8x8x32xf32, #tpu.memory_space<vmem>>, vector<1x8x32xf32>
    %308 = vector.shape_cast %307 : vector<1x8x32xf32> to vector<8x32xf32>
    %309 = vector.shape_cast %300 : vector<8x32xf32> to vector<1x8x32xf32>
    tpu.vector_store %arg12[%306, %c0_99, %c0_100], %309 {strides = array<i32>} : memref<8x8x32xf32, #tpu.memory_space<vmem>>, vector<1x8x32xf32>,
    %c4_i32 = arith.constant 4 : i32
    %c8_i32_101 = arith.constant 8 : i32
    %310 = arith.muli %c4_i32, %c8_i32_101 : i32
    %311 = tpu.assume_multiple %310, 8 : i32
    %c7_i32_102 = arith.constant 7 : i32
    %312 = arith.subi %c7_i32_102, %c4_i32 : i32
    %c8_i32_103 = arith.constant 8 : i32
    %313 = arith.muli %312, %c8_i32_103 : i32
    %314 = tpu.assume_multiple %313, 8 : i32
    %315 = arith.index_cast %311 : i32 to index
    %c0_104 = arith.constant 0 : index
    %316 = vector.load %arg9[%315, %c0_104] : memref<64x128xf32, #tpu.memory_space<vmem>>, vector<8x128xf32>
    %c0_105 = arith.constant 0 : index
    %c0_106 = arith.constant 0 : index
    %317 = vector.load %arg2[%c0_105, %c0_106] : memref<32x128xf32, #tpu.memory_space<vmem>>, vector<32x128xf32>
    %cst_107 = arith.constant dense<0.000000e+00> : vector<8x128xf32>
    %318 = tpu.matmul %270, %317, %cst_107 {dimension_numbers = #tpu.dot_dimension_numbers<[1], [0], [0], [1], [0, 0, 1, 1], [], []>} : vector<8x32xf32>, vector<32x128xf32>, vector<8x128xf32> -> vector<8x128xf32>
    %319 = arith.addf %316, %318 : vector<8x128xf32>
    %320 = vector.extract_strided_slice %319 {offsets = [0, 0], sizes = [8, 32], strides = [1, 1]} : vector<8x128xf32> to vector<8x32xf32>
    %321 = arith.negf %320 : vector<8x32xf32>
    %322 = math.exp %321 : vector<8x32xf32>
    %cst_108 = arith.constant 1.000000e+00 : f32
    %323 = vector.broadcast %cst_108 : f32 to vector<8x32xf32>
    %324 = arith.addf %323, %322 : vector<8x32xf32>
    %325 = arith.divf %323, %324 : vector<8x32xf32>
    %326 = vector.extract_strided_slice %319 {offsets = [0, 32], sizes = [8, 32], strides = [1, 1]} : vector<8x128xf32> to vector<8x32xf32>
    %327 = arith.negf %326 : vector<8x32xf32>
    %328 = math.exp %327 : vector<8x32xf32>
    %cst_109 = arith.constant 1.000000e+00 : f32
    %329 = vector.broadcast %cst_109 : f32 to vector<8x32xf32>
    %330 = arith.addf %329, %328 : vector<8x32xf32>
    %331 = arith.divf %329, %330 : vector<8x32xf32>
    %332 = vector.extract_strided_slice %319 {offsets = [0, 64], sizes = [8, 32], strides = [1, 1]} : vector<8x128xf32> to vector<8x32xf32>
    %333 = math.tanh %332 : vector<8x32xf32>
    %334 = vector.extract_strided_slice %319 {offsets = [0, 96], sizes = [8, 32], strides = [1, 1]} : vector<8x128xf32> to vector<8x32xf32>
    %335 = arith.negf %334 : vector<8x32xf32>
    %336 = math.exp %335 : vector<8x32xf32>
    %cst_110 = arith.constant 1.000000e+00 : f32
    %337 = vector.broadcast %cst_110 : f32 to vector<8x32xf32>
    %338 = arith.addf %337, %336 : vector<8x32xf32>
    %339 = arith.divf %337, %338 : vector<8x32xf32>
    %340 = arith.mulf %331, %268 : vector<8x32xf32>
    %341 = arith.mulf %325, %333 : vector<8x32xf32>
    %342 = arith.addf %340, %341 : vector<8x32xf32>
    %343 = math.tanh %342 : vector<8x32xf32>
    %344 = arith.mulf %339, %343 : vector<8x32xf32>
    %345 = arith.index_cast %314 : i32 to index
    %c0_111 = arith.constant 0 : index
    %346 = vector.load %arg10[%345, %c0_111] : memref<64x128xf32, #tpu.memory_space<vmem>>, vector<8x128xf32>
    %c0_112 = arith.constant 0 : index
    %c0_113 = arith.constant 0 : index
    %347 = vector.load %arg5[%c0_112, %c0_113] : memref<32x128xf32, #tpu.memory_space<vmem>>, vector<32x128xf32>
    %cst_114 = arith.constant dense<0.000000e+00> : vector<8x128xf32>
    %348 = tpu.matmul %300, %347, %cst_114 {dimension_numbers = #tpu.dot_dimension_numbers<[1], [0], [0], [1], [0, 0, 1, 1], [], []>} : vector<8x32xf32>, vector<32x128xf32>, vector<8x128xf32> -> vector<8x128xf32>
    %349 = arith.addf %346, %348 : vector<8x128xf32>
    %350 = vector.extract_strided_slice %349 {offsets = [0, 0], sizes = [8, 32], strides = [1, 1]} : vector<8x128xf32> to vector<8x32xf32>
    %351 = arith.negf %350 : vector<8x32xf32>
    %352 = math.exp %351 : vector<8x32xf32>
    %cst_115 = arith.constant 1.000000e+00 : f32
    %353 = vector.broadcast %cst_115 : f32 to vector<8x32xf32>
    %354 = arith.addf %353, %352 : vector<8x32xf32>
    %355 = arith.divf %353, %354 : vector<8x32xf32>
    %356 = vector.extract_strided_slice %349 {offsets = [0, 32], sizes = [8, 32], strides = [1, 1]} : vector<8x128xf32> to vector<8x32xf32>
    %357 = arith.negf %356 : vector<8x32xf32>
    %358 = math.exp %357 : vector<8x32xf32>
    %cst_116 = arith.constant 1.000000e+00 : f32
    %359 = vector.broadcast %cst_116 : f32 to vector<8x32xf32>
    %360 = arith.addf %359, %358 : vector<8x32xf32>
    %361 = arith.divf %359, %360 : vector<8x32xf32>
    %362 = vector.extract_strided_slice %349 {offsets = [0, 64], sizes = [8, 32], strides = [1, 1]} : vector<8x128xf32> to vector<8x32xf32>
    %363 = math.tanh %362 : vector<8x32xf32>
    %364 = vector.extract_strided_slice %349 {offsets = [0, 96], sizes = [8, 32], strides = [1, 1]} : vector<8x128xf32> to vector<8x32xf32>
    %365 = arith.negf %364 : vector<8x32xf32>
    %366 = math.exp %365 : vector<8x32xf32>
    %cst_117 = arith.constant 1.000000e+00 : f32
    %367 = vector.broadcast %cst_117 : f32 to vector<8x32xf32>
    %368 = arith.addf %367, %366 : vector<8x32xf32>
    %369 = arith.divf %367, %368 : vector<8x32xf32>
    %370 = arith.mulf %361, %298 : vector<8x32xf32>
    %371 = arith.mulf %355, %363 : vector<8x32xf32>
    %372 = arith.addf %370, %371 : vector<8x32xf32>
    %373 = math.tanh %372 : vector<8x32xf32>
    %374 = arith.mulf %369, %373 : vector<8x32xf32>
    %375 = arith.index_cast %c4_i32 : i32 to index
    %c0_118 = arith.constant 0 : index
    %c0_119 = arith.constant 0 : index
    %376 = vector.load %arg11[%375, %c0_118, %c0_119] : memref<8x8x32xf32, #tpu.memory_space<vmem>>, vector<1x8x32xf32>
    %377 = vector.shape_cast %376 : vector<1x8x32xf32> to vector<8x32xf32>
    %378 = vector.shape_cast %344 : vector<8x32xf32> to vector<1x8x32xf32>
    tpu.vector_store %arg11[%375, %c0_118, %c0_119], %378 {strides = array<i32>} : memref<8x8x32xf32, #tpu.memory_space<vmem>>, vector<1x8x32xf32>,
    %c7_i32_120 = arith.constant 7 : i32
    %379 = arith.subi %c7_i32_120, %c4_i32 : i32
    %380 = arith.index_cast %379 : i32 to index
    %c0_121 = arith.constant 0 : index
    %c0_122 = arith.constant 0 : index
    %381 = vector.load %arg12[%380, %c0_121, %c0_122] : memref<8x8x32xf32, #tpu.memory_space<vmem>>, vector<1x8x32xf32>
    %382 = vector.shape_cast %381 : vector<1x8x32xf32> to vector<8x32xf32>
    %383 = vector.shape_cast %374 : vector<8x32xf32> to vector<1x8x32xf32>
    tpu.vector_store %arg12[%380, %c0_121, %c0_122], %383 {strides = array<i32>} : memref<8x8x32xf32, #tpu.memory_space<vmem>>, vector<1x8x32xf32>,
    %c5_i32 = arith.constant 5 : i32
    %c8_i32_123 = arith.constant 8 : i32
    %384 = arith.muli %c5_i32, %c8_i32_123 : i32
    %385 = tpu.assume_multiple %384, 8 : i32
    %c7_i32_124 = arith.constant 7 : i32
    %386 = arith.subi %c7_i32_124, %c5_i32 : i32
    %c8_i32_125 = arith.constant 8 : i32
    %387 = arith.muli %386, %c8_i32_125 : i32
    %388 = tpu.assume_multiple %387, 8 : i32
    %389 = arith.index_cast %385 : i32 to index
    %c0_126 = arith.constant 0 : index
    %390 = vector.load %arg9[%389, %c0_126] : memref<64x128xf32, #tpu.memory_space<vmem>>, vector<8x128xf32>
    %c0_127 = arith.constant 0 : index
    %c0_128 = arith.constant 0 : index
    %391 = vector.load %arg2[%c0_127, %c0_128] : memref<32x128xf32, #tpu.memory_space<vmem>>, vector<32x128xf32>
    %cst_129 = arith.constant dense<0.000000e+00> : vector<8x128xf32>
    %392 = tpu.matmul %344, %391, %cst_129 {dimension_numbers = #tpu.dot_dimension_numbers<[1], [0], [0], [1], [0, 0, 1, 1], [], []>} : vector<8x32xf32>, vector<32x128xf32>, vector<8x128xf32> -> vector<8x128xf32>
    %393 = arith.addf %390, %392 : vector<8x128xf32>
    %394 = vector.extract_strided_slice %393 {offsets = [0, 0], sizes = [8, 32], strides = [1, 1]} : vector<8x128xf32> to vector<8x32xf32>
    %395 = arith.negf %394 : vector<8x32xf32>
    %396 = math.exp %395 : vector<8x32xf32>
    %cst_130 = arith.constant 1.000000e+00 : f32
    %397 = vector.broadcast %cst_130 : f32 to vector<8x32xf32>
    %398 = arith.addf %397, %396 : vector<8x32xf32>
    %399 = arith.divf %397, %398 : vector<8x32xf32>
    %400 = vector.extract_strided_slice %393 {offsets = [0, 32], sizes = [8, 32], strides = [1, 1]} : vector<8x128xf32> to vector<8x32xf32>
    %401 = arith.negf %400 : vector<8x32xf32>
    %402 = math.exp %401 : vector<8x32xf32>
    %cst_131 = arith.constant 1.000000e+00 : f32
    %403 = vector.broadcast %cst_131 : f32 to vector<8x32xf32>
    %404 = arith.addf %403, %402 : vector<8x32xf32>
    %405 = arith.divf %403, %404 : vector<8x32xf32>
    %406 = vector.extract_strided_slice %393 {offsets = [0, 64], sizes = [8, 32], strides = [1, 1]} : vector<8x128xf32> to vector<8x32xf32>
    %407 = math.tanh %406 : vector<8x32xf32>
    %408 = vector.extract_strided_slice %393 {offsets = [0, 96], sizes = [8, 32], strides = [1, 1]} : vector<8x128xf32> to vector<8x32xf32>
    %409 = arith.negf %408 : vector<8x32xf32>
    %410 = math.exp %409 : vector<8x32xf32>
    %cst_132 = arith.constant 1.000000e+00 : f32
    %411 = vector.broadcast %cst_132 : f32 to vector<8x32xf32>
    %412 = arith.addf %411, %410 : vector<8x32xf32>
    %413 = arith.divf %411, %412 : vector<8x32xf32>
    %414 = arith.mulf %405, %342 : vector<8x32xf32>
    %415 = arith.mulf %399, %407 : vector<8x32xf32>
    %416 = arith.addf %414, %415 : vector<8x32xf32>
    %417 = math.tanh %416 : vector<8x32xf32>
    %418 = arith.mulf %413, %417 : vector<8x32xf32>
    %419 = arith.index_cast %388 : i32 to index
    %c0_133 = arith.constant 0 : index
    %420 = vector.load %arg10[%419, %c0_133] : memref<64x128xf32, #tpu.memory_space<vmem>>, vector<8x128xf32>
    %c0_134 = arith.constant 0 : index
    %c0_135 = arith.constant 0 : index
    %421 = vector.load %arg5[%c0_134, %c0_135] : memref<32x128xf32, #tpu.memory_space<vmem>>, vector<32x128xf32>
    %cst_136 = arith.constant dense<0.000000e+00> : vector<8x128xf32>
    %422 = tpu.matmul %374, %421, %cst_136 {dimension_numbers = #tpu.dot_dimension_numbers<[1], [0], [0], [1], [0, 0, 1, 1], [], []>} : vector<8x32xf32>, vector<32x128xf32>, vector<8x128xf32> -> vector<8x128xf32>
    %423 = arith.addf %420, %422 : vector<8x128xf32>
    %424 = vector.extract_strided_slice %423 {offsets = [0, 0], sizes = [8, 32], strides = [1, 1]} : vector<8x128xf32> to vector<8x32xf32>
    %425 = arith.negf %424 : vector<8x32xf32>
    %426 = math.exp %425 : vector<8x32xf32>
    %cst_137 = arith.constant 1.000000e+00 : f32
    %427 = vector.broadcast %cst_137 : f32 to vector<8x32xf32>
    %428 = arith.addf %427, %426 : vector<8x32xf32>
    %429 = arith.divf %427, %428 : vector<8x32xf32>
    %430 = vector.extract_strided_slice %423 {offsets = [0, 32], sizes = [8, 32], strides = [1, 1]} : vector<8x128xf32> to vector<8x32xf32>
    %431 = arith.negf %430 : vector<8x32xf32>
    %432 = math.exp %431 : vector<8x32xf32>
    %cst_138 = arith.constant 1.000000e+00 : f32
    %433 = vector.broadcast %cst_138 : f32 to vector<8x32xf32>
    %434 = arith.addf %433, %432 : vector<8x32xf32>
    %435 = arith.divf %433, %434 : vector<8x32xf32>
    %436 = vector.extract_strided_slice %423 {offsets = [0, 64], sizes = [8, 32], strides = [1, 1]} : vector<8x128xf32> to vector<8x32xf32>
    %437 = math.tanh %436 : vector<8x32xf32>
    %438 = vector.extract_strided_slice %423 {offsets = [0, 96], sizes = [8, 32], strides = [1, 1]} : vector<8x128xf32> to vector<8x32xf32>
    %439 = arith.negf %438 : vector<8x32xf32>
    %440 = math.exp %439 : vector<8x32xf32>
    %cst_139 = arith.constant 1.000000e+00 : f32
    %441 = vector.broadcast %cst_139 : f32 to vector<8x32xf32>
    %442 = arith.addf %441, %440 : vector<8x32xf32>
    %443 = arith.divf %441, %442 : vector<8x32xf32>
    %444 = arith.mulf %435, %372 : vector<8x32xf32>
    %445 = arith.mulf %429, %437 : vector<8x32xf32>
    %446 = arith.addf %444, %445 : vector<8x32xf32>
    %447 = math.tanh %446 : vector<8x32xf32>
    %448 = arith.mulf %443, %447 : vector<8x32xf32>
    %449 = arith.index_cast %c5_i32 : i32 to index
    %c0_140 = arith.constant 0 : index
    %c0_141 = arith.constant 0 : index
    %450 = vector.load %arg11[%449, %c0_140, %c0_141] : memref<8x8x32xf32, #tpu.memory_space<vmem>>, vector<1x8x32xf32>
    %451 = vector.shape_cast %450 : vector<1x8x32xf32> to vector<8x32xf32>
    %452 = vector.shape_cast %418 : vector<8x32xf32> to vector<1x8x32xf32>
    tpu.vector_store %arg11[%449, %c0_140, %c0_141], %452 {strides = array<i32>} : memref<8x8x32xf32, #tpu.memory_space<vmem>>, vector<1x8x32xf32>,
    %c7_i32_142 = arith.constant 7 : i32
    %453 = arith.subi %c7_i32_142, %c5_i32 : i32
    %454 = arith.index_cast %453 : i32 to index
    %c0_143 = arith.constant 0 : index
    %c0_144 = arith.constant 0 : index
    %455 = vector.load %arg12[%454, %c0_143, %c0_144] : memref<8x8x32xf32, #tpu.memory_space<vmem>>, vector<1x8x32xf32>
    %456 = vector.shape_cast %455 : vector<1x8x32xf32> to vector<8x32xf32>
    %457 = vector.shape_cast %448 : vector<8x32xf32> to vector<1x8x32xf32>
    tpu.vector_store %arg12[%454, %c0_143, %c0_144], %457 {strides = array<i32>} : memref<8x8x32xf32, #tpu.memory_space<vmem>>, vector<1x8x32xf32>,
    %c6_i32 = arith.constant 6 : i32
    %c8_i32_145 = arith.constant 8 : i32
    %458 = arith.muli %c6_i32, %c8_i32_145 : i32
    %459 = tpu.assume_multiple %458, 8 : i32
    %c7_i32_146 = arith.constant 7 : i32
    %460 = arith.subi %c7_i32_146, %c6_i32 : i32
    %c8_i32_147 = arith.constant 8 : i32
    %461 = arith.muli %460, %c8_i32_147 : i32
    %462 = tpu.assume_multiple %461, 8 : i32
    %463 = arith.index_cast %459 : i32 to index
    %c0_148 = arith.constant 0 : index
    %464 = vector.load %arg9[%463, %c0_148] : memref<64x128xf32, #tpu.memory_space<vmem>>, vector<8x128xf32>
    %c0_149 = arith.constant 0 : index
    %c0_150 = arith.constant 0 : index
    %465 = vector.load %arg2[%c0_149, %c0_150] : memref<32x128xf32, #tpu.memory_space<vmem>>, vector<32x128xf32>
    %cst_151 = arith.constant dense<0.000000e+00> : vector<8x128xf32>
    %466 = tpu.matmul %418, %465, %cst_151 {dimension_numbers = #tpu.dot_dimension_numbers<[1], [0], [0], [1], [0, 0, 1, 1], [], []>} : vector<8x32xf32>, vector<32x128xf32>, vector<8x128xf32> -> vector<8x128xf32>
    %467 = arith.addf %464, %466 : vector<8x128xf32>
    %468 = vector.extract_strided_slice %467 {offsets = [0, 0], sizes = [8, 32], strides = [1, 1]} : vector<8x128xf32> to vector<8x32xf32>
    %469 = arith.negf %468 : vector<8x32xf32>
    %470 = math.exp %469 : vector<8x32xf32>
    %cst_152 = arith.constant 1.000000e+00 : f32
    %471 = vector.broadcast %cst_152 : f32 to vector<8x32xf32>
    %472 = arith.addf %471, %470 : vector<8x32xf32>
    %473 = arith.divf %471, %472 : vector<8x32xf32>
    %474 = vector.extract_strided_slice %467 {offsets = [0, 32], sizes = [8, 32], strides = [1, 1]} : vector<8x128xf32> to vector<8x32xf32>
    %475 = arith.negf %474 : vector<8x32xf32>
    %476 = math.exp %475 : vector<8x32xf32>
    %cst_153 = arith.constant 1.000000e+00 : f32
    %477 = vector.broadcast %cst_153 : f32 to vector<8x32xf32>
    %478 = arith.addf %477, %476 : vector<8x32xf32>
    %479 = arith.divf %477, %478 : vector<8x32xf32>
    %480 = vector.extract_strided_slice %467 {offsets = [0, 64], sizes = [8, 32], strides = [1, 1]} : vector<8x128xf32> to vector<8x32xf32>
    %481 = math.tanh %480 : vector<8x32xf32>
    %482 = vector.extract_strided_slice %467 {offsets = [0, 96], sizes = [8, 32], strides = [1, 1]} : vector<8x128xf32> to vector<8x32xf32>
    %483 = arith.negf %482 : vector<8x32xf32>
    %484 = math.exp %483 : vector<8x32xf32>
    %cst_154 = arith.constant 1.000000e+00 : f32
    %485 = vector.broadcast %cst_154 : f32 to vector<8x32xf32>
    %486 = arith.addf %485, %484 : vector<8x32xf32>
    %487 = arith.divf %485, %486 : vector<8x32xf32>
    %488 = arith.mulf %479, %416 : vector<8x32xf32>
    %489 = arith.mulf %473, %481 : vector<8x32xf32>
    %490 = arith.addf %488, %489 : vector<8x32xf32>
    %491 = math.tanh %490 : vector<8x32xf32>
    %492 = arith.mulf %487, %491 : vector<8x32xf32>
    %493 = arith.index_cast %462 : i32 to index
    %c0_155 = arith.constant 0 : index
    %494 = vector.load %arg10[%493, %c0_155] : memref<64x128xf32, #tpu.memory_space<vmem>>, vector<8x128xf32>
    %c0_156 = arith.constant 0 : index
    %c0_157 = arith.constant 0 : index
    %495 = vector.load %arg5[%c0_156, %c0_157] : memref<32x128xf32, #tpu.memory_space<vmem>>, vector<32x128xf32>
    %cst_158 = arith.constant dense<0.000000e+00> : vector<8x128xf32>
    %496 = tpu.matmul %448, %495, %cst_158 {dimension_numbers = #tpu.dot_dimension_numbers<[1], [0], [0], [1], [0, 0, 1, 1], [], []>} : vector<8x32xf32>, vector<32x128xf32>, vector<8x128xf32> -> vector<8x128xf32>
    %497 = arith.addf %494, %496 : vector<8x128xf32>
    %498 = vector.extract_strided_slice %497 {offsets = [0, 0], sizes = [8, 32], strides = [1, 1]} : vector<8x128xf32> to vector<8x32xf32>
    %499 = arith.negf %498 : vector<8x32xf32>
    %500 = math.exp %499 : vector<8x32xf32>
    %cst_159 = arith.constant 1.000000e+00 : f32
    %501 = vector.broadcast %cst_159 : f32 to vector<8x32xf32>
    %502 = arith.addf %501, %500 : vector<8x32xf32>
    %503 = arith.divf %501, %502 : vector<8x32xf32>
    %504 = vector.extract_strided_slice %497 {offsets = [0, 32], sizes = [8, 32], strides = [1, 1]} : vector<8x128xf32> to vector<8x32xf32>
    %505 = arith.negf %504 : vector<8x32xf32>
    %506 = math.exp %505 : vector<8x32xf32>
    %cst_160 = arith.constant 1.000000e+00 : f32
    %507 = vector.broadcast %cst_160 : f32 to vector<8x32xf32>
    %508 = arith.addf %507, %506 : vector<8x32xf32>
    %509 = arith.divf %507, %508 : vector<8x32xf32>
    %510 = vector.extract_strided_slice %497 {offsets = [0, 64], sizes = [8, 32], strides = [1, 1]} : vector<8x128xf32> to vector<8x32xf32>
    %511 = math.tanh %510 : vector<8x32xf32>
    %512 = vector.extract_strided_slice %497 {offsets = [0, 96], sizes = [8, 32], strides = [1, 1]} : vector<8x128xf32> to vector<8x32xf32>
    %513 = arith.negf %512 : vector<8x32xf32>
    %514 = math.exp %513 : vector<8x32xf32>
    %cst_161 = arith.constant 1.000000e+00 : f32
    %515 = vector.broadcast %cst_161 : f32 to vector<8x32xf32>
    %516 = arith.addf %515, %514 : vector<8x32xf32>
    %517 = arith.divf %515, %516 : vector<8x32xf32>
    %518 = arith.mulf %509, %446 : vector<8x32xf32>
    %519 = arith.mulf %503, %511 : vector<8x32xf32>
    %520 = arith.addf %518, %519 : vector<8x32xf32>
    %521 = math.tanh %520 : vector<8x32xf32>
    %522 = arith.mulf %517, %521 : vector<8x32xf32>
    %523 = arith.index_cast %c6_i32 : i32 to index
    %c0_162 = arith.constant 0 : index
    %c0_163 = arith.constant 0 : index
    %524 = vector.load %arg11[%523, %c0_162, %c0_163] : memref<8x8x32xf32, #tpu.memory_space<vmem>>, vector<1x8x32xf32>
    %525 = vector.shape_cast %524 : vector<1x8x32xf32> to vector<8x32xf32>
    %526 = vector.shape_cast %492 : vector<8x32xf32> to vector<1x8x32xf32>
    tpu.vector_store %arg11[%523, %c0_162, %c0_163], %526 {strides = array<i32>} : memref<8x8x32xf32, #tpu.memory_space<vmem>>, vector<1x8x32xf32>,
    %c7_i32_164 = arith.constant 7 : i32
    %527 = arith.subi %c7_i32_164, %c6_i32 : i32
    %528 = arith.index_cast %527 : i32 to index
    %c0_165 = arith.constant 0 : index
    %c0_166 = arith.constant 0 : index
    %529 = vector.load %arg12[%528, %c0_165, %c0_166] : memref<8x8x32xf32, #tpu.memory_space<vmem>>, vector<1x8x32xf32>
    %530 = vector.shape_cast %529 : vector<1x8x32xf32> to vector<8x32xf32>
    %531 = vector.shape_cast %522 : vector<8x32xf32> to vector<1x8x32xf32>
    tpu.vector_store %arg12[%528, %c0_165, %c0_166], %531 {strides = array<i32>} : memref<8x8x32xf32, #tpu.memory_space<vmem>>, vector<1x8x32xf32>,
    %c7_i32_167 = arith.constant 7 : i32
    %c8_i32_168 = arith.constant 8 : i32
    %532 = arith.muli %c7_i32_167, %c8_i32_168 : i32
    %533 = tpu.assume_multiple %532, 8 : i32
    %c7_i32_169 = arith.constant 7 : i32
    %534 = arith.subi %c7_i32_169, %c7_i32_167 : i32
    %c8_i32_170 = arith.constant 8 : i32
    %535 = arith.muli %534, %c8_i32_170 : i32
    %536 = tpu.assume_multiple %535, 8 : i32
    %537 = arith.index_cast %533 : i32 to index
    %c0_171 = arith.constant 0 : index
    %538 = vector.load %arg9[%537, %c0_171] : memref<64x128xf32, #tpu.memory_space<vmem>>, vector<8x128xf32>
    %c0_172 = arith.constant 0 : index
    %c0_173 = arith.constant 0 : index
    %539 = vector.load %arg2[%c0_172, %c0_173] : memref<32x128xf32, #tpu.memory_space<vmem>>, vector<32x128xf32>
    %cst_174 = arith.constant dense<0.000000e+00> : vector<8x128xf32>
    %540 = tpu.matmul %492, %539, %cst_174 {dimension_numbers = #tpu.dot_dimension_numbers<[1], [0], [0], [1], [0, 0, 1, 1], [], []>} : vector<8x32xf32>, vector<32x128xf32>, vector<8x128xf32> -> vector<8x128xf32>
    %541 = arith.addf %538, %540 : vector<8x128xf32>
    %542 = vector.extract_strided_slice %541 {offsets = [0, 0], sizes = [8, 32], strides = [1, 1]} : vector<8x128xf32> to vector<8x32xf32>
    %543 = arith.negf %542 : vector<8x32xf32>
    %544 = math.exp %543 : vector<8x32xf32>
    %cst_175 = arith.constant 1.000000e+00 : f32
    %545 = vector.broadcast %cst_175 : f32 to vector<8x32xf32>
    %546 = arith.addf %545, %544 : vector<8x32xf32>
    %547 = arith.divf %545, %546 : vector<8x32xf32>
    %548 = vector.extract_strided_slice %541 {offsets = [0, 32], sizes = [8, 32], strides = [1, 1]} : vector<8x128xf32> to vector<8x32xf32>
    %549 = arith.negf %548 : vector<8x32xf32>
    %550 = math.exp %549 : vector<8x32xf32>
    %cst_176 = arith.constant 1.000000e+00 : f32
    %551 = vector.broadcast %cst_176 : f32 to vector<8x32xf32>
    %552 = arith.addf %551, %550 : vector<8x32xf32>
    %553 = arith.divf %551, %552 : vector<8x32xf32>
    %554 = vector.extract_strided_slice %541 {offsets = [0, 64], sizes = [8, 32], strides = [1, 1]} : vector<8x128xf32> to vector<8x32xf32>
    %555 = math.tanh %554 : vector<8x32xf32>
    %556 = vector.extract_strided_slice %541 {offsets = [0, 96], sizes = [8, 32], strides = [1, 1]} : vector<8x128xf32> to vector<8x32xf32>
    %557 = arith.negf %556 : vector<8x32xf32>
    %558 = math.exp %557 : vector<8x32xf32>
    %cst_177 = arith.constant 1.000000e+00 : f32
    %559 = vector.broadcast %cst_177 : f32 to vector<8x32xf32>
    %560 = arith.addf %559, %558 : vector<8x32xf32>
    %561 = arith.divf %559, %560 : vector<8x32xf32>
    %562 = arith.mulf %553, %490 : vector<8x32xf32>
    %563 = arith.mulf %547, %555 : vector<8x32xf32>
    %564 = arith.addf %562, %563 : vector<8x32xf32>
    %565 = math.tanh %564 : vector<8x32xf32>
    %566 = arith.mulf %561, %565 : vector<8x32xf32>
    %567 = arith.index_cast %536 : i32 to index
    %c0_178 = arith.constant 0 : index
    %568 = vector.load %arg10[%567, %c0_178] : memref<64x128xf32, #tpu.memory_space<vmem>>, vector<8x128xf32>
    %c0_179 = arith.constant 0 : index
    %c0_180 = arith.constant 0 : index
    %569 = vector.load %arg5[%c0_179, %c0_180] : memref<32x128xf32, #tpu.memory_space<vmem>>, vector<32x128xf32>
    %cst_181 = arith.constant dense<0.000000e+00> : vector<8x128xf32>
    %570 = tpu.matmul %522, %569, %cst_181 {dimension_numbers = #tpu.dot_dimension_numbers<[1], [0], [0], [1], [0, 0, 1, 1], [], []>} : vector<8x32xf32>, vector<32x128xf32>, vector<8x128xf32> -> vector<8x128xf32>
    %571 = arith.addf %568, %570 : vector<8x128xf32>
    %572 = vector.extract_strided_slice %571 {offsets = [0, 0], sizes = [8, 32], strides = [1, 1]} : vector<8x128xf32> to vector<8x32xf32>
    %573 = arith.negf %572 : vector<8x32xf32>
    %574 = math.exp %573 : vector<8x32xf32>
    %cst_182 = arith.constant 1.000000e+00 : f32
    %575 = vector.broadcast %cst_182 : f32 to vector<8x32xf32>
    %576 = arith.addf %575, %574 : vector<8x32xf32>
    %577 = arith.divf %575, %576 : vector<8x32xf32>
    %578 = vector.extract_strided_slice %571 {offsets = [0, 32], sizes = [8, 32], strides = [1, 1]} : vector<8x128xf32> to vector<8x32xf32>
    %579 = arith.negf %578 : vector<8x32xf32>
    %580 = math.exp %579 : vector<8x32xf32>
    %cst_183 = arith.constant 1.000000e+00 : f32
    %581 = vector.broadcast %cst_183 : f32 to vector<8x32xf32>
    %582 = arith.addf %581, %580 : vector<8x32xf32>
    %583 = arith.divf %581, %582 : vector<8x32xf32>
    %584 = vector.extract_strided_slice %571 {offsets = [0, 64], sizes = [8, 32], strides = [1, 1]} : vector<8x128xf32> to vector<8x32xf32>
    %585 = math.tanh %584 : vector<8x32xf32>
    %586 = vector.extract_strided_slice %571 {offsets = [0, 96], sizes = [8, 32], strides = [1, 1]} : vector<8x128xf32> to vector<8x32xf32>
    %587 = arith.negf %586 : vector<8x32xf32>
    %588 = math.exp %587 : vector<8x32xf32>
    %cst_184 = arith.constant 1.000000e+00 : f32
    %589 = vector.broadcast %cst_184 : f32 to vector<8x32xf32>
    %590 = arith.addf %589, %588 : vector<8x32xf32>
    %591 = arith.divf %589, %590 : vector<8x32xf32>
    %592 = arith.mulf %583, %520 : vector<8x32xf32>
    %593 = arith.mulf %577, %585 : vector<8x32xf32>
    %594 = arith.addf %592, %593 : vector<8x32xf32>
    %595 = math.tanh %594 : vector<8x32xf32>
    %596 = arith.mulf %591, %595 : vector<8x32xf32>
    %597 = arith.index_cast %c7_i32_167 : i32 to index
    %c0_185 = arith.constant 0 : index
    %c0_186 = arith.constant 0 : index
    %598 = vector.load %arg11[%597, %c0_185, %c0_186] : memref<8x8x32xf32, #tpu.memory_space<vmem>>, vector<1x8x32xf32>
    %599 = vector.shape_cast %598 : vector<1x8x32xf32> to vector<8x32xf32>
    %600 = vector.shape_cast %566 : vector<8x32xf32> to vector<1x8x32xf32>
    tpu.vector_store %arg11[%597, %c0_185, %c0_186], %600 {strides = array<i32>} : memref<8x8x32xf32, #tpu.memory_space<vmem>>, vector<1x8x32xf32>,
    %c7_i32_187 = arith.constant 7 : i32
    %601 = arith.subi %c7_i32_187, %c7_i32_167 : i32
    %602 = arith.index_cast %601 : i32 to index
    %c0_188 = arith.constant 0 : index
    %c0_189 = arith.constant 0 : index
    %603 = vector.load %arg12[%602, %c0_188, %c0_189] : memref<8x8x32xf32, #tpu.memory_space<vmem>>, vector<1x8x32xf32>
    %604 = vector.shape_cast %603 : vector<1x8x32xf32> to vector<8x32xf32>
    %605 = vector.shape_cast %596 : vector<8x32xf32> to vector<1x8x32xf32>
    tpu.vector_store %arg12[%602, %c0_188, %c0_189], %605 {strides = array<i32>} : memref<8x8x32xf32, #tpu.memory_space<vmem>>, vector<1x8x32xf32>,
    %c8_i32_190 = arith.constant 8 : i32
    %c0_191 = arith.constant 0 : index
    %c0_192 = arith.constant 0 : index
    %c0_193 = arith.constant 0 : index
    %606 = vector.load %arg11[%c0_191, %c0_192, %c0_193] : memref<8x8x32xf32, #tpu.memory_space<vmem>>, vector<8x8x32xf32>
    %c0_194 = arith.constant 0 : index
    %c0_195 = arith.constant 0 : index
    %c0_196 = arith.constant 0 : index
    %607 = vector.load %arg12[%c0_194, %c0_195, %c0_196] : memref<8x8x32xf32, #tpu.memory_space<vmem>>, vector<8x8x32xf32>
    %608 = arith.addf %606, %607 : vector<8x8x32xf32>
    %cst_197 = arith.constant 5.000000e-01 : f32
    %609 = vector.broadcast %cst_197 : f32 to vector<8x8x32xf32>
    %610 = arith.mulf %609, %608 : vector<8x8x32xf32>
    %cst_198 = arith.constant dense<0xFF800000> : vector<8x32xf32>
    %611 = vector.multi_reduction <maximumf>, %610, %cst_198 [0] : vector<8x8x32xf32> to vector<8x32xf32>
    %c0_199 = arith.constant 0 : index
    %c0_200 = arith.constant 0 : index
    %612 = vector.load %arg7[%c0_199, %c0_200] : memref<32x128xf32, #tpu.memory_space<vmem>>, vector<32x128xf32>
    %cst_201 = arith.constant dense<0.000000e+00> : vector<8x128xf32>
    %613 = tpu.matmul %611, %612, %cst_201 {dimension_numbers = #tpu.dot_dimension_numbers<[1], [0], [0], [1], [0, 0, 1, 1], [], []>} : vector<8x32xf32>, vector<32x128xf32>, vector<8x128xf32> -> vector<8x128xf32>
    %c0_202 = arith.constant 0 : index
    %c0_203 = arith.constant 0 : index
    %614 = vector.load %arg8[%c0_202, %c0_203] : memref<8x128xf32, #tpu.memory_space<vmem>>, vector<8x128xf32>
    tpu.vector_store %arg8[%c0_202, %c0_203], %613 {strides = array<i32>} : memref<8x128xf32, #tpu.memory_space<vmem>>, vector<8x128xf32>,
    return
  }
}

</mosaic_0001>

<llo_original>
// kernel: tpu_custom_call.1
$region0: #{tpu_custom_call.1}
  #allocation0 [shape = 'u32[]', space=smem, size = 0x4, offset = 0x4, fixed_abs, tag = 'smem constant byte address 0x4 - core index']
  #allocation1 [shape = 'u32[72,128]{1,0:T(1,128)}', space=vmem, size = 0x9000, scoped, tag = 'internal scratch']
  #allocation2 [shape = 'f32[64,128]{1,0:T(8,128)}', space=vmem, size = 0x8000, scoped, tag = 'scratch operand']
  #allocation3 [shape = 'f32[64,128]{1,0:T(8,128)}', space=vmem, size = 0x8000, scoped, tag = 'scratch operand']
  #allocation4 [shape = 'f32[8,8,32]{2,1,0:T(8,128)}', space=vmem, size = 0x8000, scoped, tag = 'scratch operand']
  #allocation5 [shape = 'f32[8,8,32]{2,1,0:T(8,128)}', space=vmem, size = 0x8000, scoped, tag = 'scratch operand']
  %s0 = inlined_call_operand.vmem [shape: f32[64,32], index: 0, kind: input, shape index: {}]
  %s1 = inlined_call_operand.vmem [shape: f32[32,128], index: 1, kind: input, shape index: {}]
  %s2 = inlined_call_operand.vmem [shape: f32[32,128], index: 2, kind: input, shape index: {}]
  %s3 = inlined_call_operand.vmem [shape: f32[1,128], index: 3, kind: input, shape index: {}]
  %s4 = inlined_call_operand.vmem [shape: f32[32,128], index: 4, kind: input, shape index: {}]
  %s5 = inlined_call_operand.hbm [shape: f32[32,128], index: 5, kind: input, shape index: {}]
  %s6 = inlined_call_operand.vmem [shape: f32[1,128], index: 6, kind: input, shape index: {}]
  %s7 = inlined_call_operand.hbm [shape: f32[32,128], index: 7, kind: input, shape index: {}]
  %s8 = inlined_call_operand.hbm [shape: f32[8,128], index: 8, kind: output, shape index: {}]
  %s9 = sld [smem:[#allocation0]]
  $region50: #{tpu_custom_call.1} parent=0
    _
  %s11 = ssub.s32 1, %s9
  %s12 = scalar_select 0, %s11, %s9
  $region1: #{tpu_custom_call.1} parent=0
    #allocation6 [shape = 'u8[16384]{0}', space=vmem, size = 0x4000, scoped, tag = 'input window, operand 5, single buffered']
    #allocation7 [shape = 's32[1]{0}', space=sflag, size = 0x4, scoped, tag = 'scoped memory for tpu_custom_call.1']
    #allocation8 [shape = 's32[1]{0}', space=sflag, size = 0x4, scoped, tag = 'scoped memory for tpu_custom_call.1']
    #allocation9 [shape = 'u8[16384]{0}', space=vmem, size = 0x4000, scoped, tag = 'input window, operand 7, single buffered']
    #allocation10 [shape = 's32[1]{0}', space=sflag, size = 0x4, scoped, tag = 'scoped memory for tpu_custom_call.1']
    #allocation11 [shape = 'u8[4096]{0}', space=vmem, size = 0x1000, scoped, tag = 'output window, operand 0, single buffered']
    %13 = vsyncpa [#allocation7], 0
    %14 = vsyncpa [#allocation10], 0
    %15 = vsyncpa [#allocation8], 0
    // Predicated region
    $region2: #{tpu_custom_call.1} parent=1 // pred_check
      _
    $region3: #{tpu_custom_call.1} parent=1 // pred_check_branch
      %17 = sbr.rel (0) target = $region5
    $region4: #{tpu_custom_call.1} parent=1 // pred_region
      _
    $region5: #{tpu_custom_call.1} parent=1 // pred_fallthru
      _
    // Predicated region
    $region6: #{tpu_custom_call.1} parent=1 // pred_check
      _
    $region7: #{tpu_custom_call.1} parent=1 // pred_check_branch
      %19 = sbr.rel (0) target = $region9
    $region8: #{tpu_custom_call.1} parent=1 // pred_region
      _
    $region9: #{tpu_custom_call.1} parent=1 // pred_fallthru
      _
    // Predicated region
    $region10: #{tpu_custom_call.1} parent=1 // pred_check
      _
    $region11: #{tpu_custom_call.1} parent=1 // pred_check_branch
      %21 = sbr.rel (0) target = $region13
    $region12: #{tpu_custom_call.1} parent=1 // pred_region
      _
    $region13: #{tpu_custom_call.1} parent=1 // pred_fallthru
      _
    // Predicated region
    $region14: #{tpu_custom_call.1} parent=1 // pred_check
      _
    $region15: #{tpu_custom_call.1} parent=1 // pred_check_branch
      %23 = sbr.rel (0) target = $region17
    $region16: #{tpu_custom_call.1} parent=1 // pred_region
      _
    $region17: #{tpu_custom_call.1} parent=1 // pred_fallthru
      _
    // Predicated region
    $region18: #{tpu_custom_call.1} parent=1 // pred_check
      _
    $region19: #{tpu_custom_call.1} parent=1 // pred_check_branch
      %25 = sbr.rel (0) target = $region21
    $region20: #{tpu_custom_call.1} parent=1 // pred_region
      _
    $region21: #{tpu_custom_call.1} parent=1 // pred_fallthru
      _
    // Predicated region
    $region22: #{tpu_custom_call.1} parent=1 // pred_check
      _
    $region23: #{tpu_custom_call.1} parent=1 // pred_check_branch
      %27 = sbr.rel (0) target = $region25
    $region24: #{tpu_custom_call.1} parent=1 // pred_region
      %29 = vsyncadd [#allocation7], 0
      %s30 = sshll.u32 %s5, 4
      %s31 = int_to_ptr.hbm [resolvable:$true] %s30
      %s32 = sshll.u32 [#allocation6], 4
      %s33 = int_to_ptr.vmem [resolvable:$true] %s32
      %38 = dma.hbm_to_vmem [thread:$0]  %s31, 512, %s33, [#allocation7], 128, 128, 8
    $region25: #{tpu_custom_call.1} parent=1 // pred_fallthru
      _
    // Predicated region
    $region26: #{tpu_custom_call.1} parent=1 // pred_check
      _
    $region27: #{tpu_custom_call.1} parent=1 // pred_check_branch
      %40 = sbr.rel (0) target = $region29
    $region28: #{tpu_custom_call.1} parent=1 // pred_region
      _
    $region29: #{tpu_custom_call.1} parent=1 // pred_fallthru
      _
    // Predicated region
    $region30: #{tpu_custom_call.1} parent=1 // pred_check
      _
    $region31: #{tpu_custom_call.1} parent=1 // pred_check_branch
      %42 = sbr.rel (0) target = $region33
    $region32: #{tpu_custom_call.1} parent=1 // pred_region
      %44 = vsyncadd [#allocation10], 0
      %s45 = sshll.u32 %s7, 4
      %s46 = int_to_ptr.hbm [resolvable:$true] %s45
      %s47 = sshll.u32 [#allocation9], 4
      %s48 = int_to_ptr.vmem [resolvable:$true] %s47
      %53 = dma.hbm_to_vmem [thread:$0]  %s46, 512, %s48, [#allocation10], 128, 128, 8
    $region33: #{tpu_custom_call.1} parent=1 // pred_fallthru
      _
    // Predicated region
    $region34: #{tpu_custom_call.1} parent=1 // pred_check
      _
    $region35: #{tpu_custom_call.1} parent=1 // pred_check_branch
      %55 = sbr.rel (0) target = $region37
    $region36: #{tpu_custom_call.1} parent=1 // pred_region
      %57 = dma.done [#allocation7], 512
    $region37: #{tpu_custom_call.1} parent=1 // pred_fallthru
      _
    // Predicated region
    $region38: #{tpu_custom_call.1} parent=1 // pred_check
      _
    $region39: #{tpu_custom_call.1} parent=1 // pred_check_branch
      %59 = sbr.rel (0) target = $region41
    $region40: #{tpu_custom_call.1} parent=1 // pred_region
      %61 = dma.done [#allocation10], 512
    $region41: #{tpu_custom_call.1} parent=1 // pred_fallthru
      _
    %v62 = vld [vmem:[%s0] sm:$0xff]
    %v63 = vld [vmem:[%s0 + $0x8] sm:$0xff]
    %v64 = vld [vmem:[%s0 + $0x10] sm:$0xff]
    %v65 = vld [vmem:[%s0 + $0x18] sm:$0xff]
    %v66 = vld [vmem:[%s0 + $0x20] sm:$0xff]
    %v67 = vld [vmem:[%s0 + $0x28] sm:$0xff]
    %v68 = vld [vmem:[%s0 + $0x30] sm:$0xff]
    %v69 = vld [vmem:[%s0 + $0x38] sm:$0xff]
    %v70 = vld [vmem:[%s1] sm:$0xff]
    %v71 = vld [vmem:[%s1 + $0x8] sm:$0xff]
    %v72 = vld [vmem:[%s1 + $0x10] sm:$0xff]
    %v73 = vld [vmem:[%s1 + $0x18] sm:$0xff]
    %v74 = vld [vmem:[%s3] sm:$0x1]
    %v76 = vperm.slane %v74, 0
    %vm78 = vcmask 261120
    %v80 = vsel %vm78, %v62, 0
    %v83 = vsel %vm78, %v63, 0
    %v86 = vsel %vm78, %v64, 0
    %v89 = vsel %vm78, %v65, 0
    %v92 = vsel %vm78, %v66, 0
    %v95 = vsel %vm78, %v67, 0
    %v98 = vsel %vm78, %v68, 0
    %v101 = vsel %vm78, %v69, 0
    %103 = vmatpush.msra.mxu0 0.0
    %104 = vmatpush.msra.mxu0 0.0
    %105 = vmatpush.msra.mxu0 0.0
    %106 = vmatpush.msra.mxu0 0.0
    %107 = vmatpush.msra.mxu0 0.0
    %108 = vmatpush.msra.mxu0 0.0
    %109 = vmatpush.msra.mxu0 0.0
    %110 = vmatpush.msra.mxu0 0.0
    %111 = vmatpush.msra.mxu0 0.0
    %112 = vmatpush.msra.mxu0 0.0
    %113 = vmatpush.msra.mxu0 0.0
    %114 = vmatpush.msra.mxu0 0.0
    %115 = vmatpush.msra.mxu0 %v73
    %116 = vmatpush.msra.mxu0 %v72
    %117 = vmatpush.msra.mxu0 %v71
    %118 = vmatpush.msra.mxu0 %v70
    %119 = vmatmul.f32.gmra.mxu0 %v80
    %v120 = vpop.f32.mrf.mxu0
    %v121 = vadd.f32 %v76, %v120
    %122 = vmatmul.f32.gmra.mxu0 %v83
    %v123 = vpop.f32.mrf.mxu0
    %v124 = vadd.f32 %v76, %v123
    %125 = vmatmul.f32.gmra.mxu0 %v86
    %v126 = vpop.f32.mrf.mxu0
    %v127 = vadd.f32 %v76, %v126
    %128 = vmatmul.f32.gmra.mxu0 %v89
    %v129 = vpop.f32.mrf.mxu0
    %v130 = vadd.f32 %v76, %v129
    %131 = vmatmul.f32.gmra.mxu0 %v92
    %v132 = vpop.f32.mrf.mxu0
    %v133 = vadd.f32 %v76, %v132
    %134 = vmatmul.f32.gmra.mxu0 %v95
    %v135 = vpop.f32.mrf.mxu0
    %v136 = vadd.f32 %v76, %v135
    %137 = vmatmul.f32.gmra.mxu0 %v98
    %v138 = vpop.f32.mrf.mxu0
    %v139 = vadd.f32 %v76, %v138
    %140 = vmatmul.f32.gmra.mxu0 %v101
    %v141 = vpop.f32.mrf.mxu0
    %v142 = vadd.f32 %v76, %v141
    %143 = vdwg.mxu0
    %144 = vst [vmem:[#allocation2] sm:$0xff] %v121
    %145 = vst [vmem:[#allocation2 + $0x8] sm:$0xff] %v124
    %146 = vst [vmem:[#allocation2 + $0x10] sm:$0xff] %v127
    %147 = vst [vmem:[#allocation2 + $0x18] sm:$0xff] %v130
    %148 = vst [vmem:[#allocation2 + $0x20] sm:$0xff] %v133
    %149 = vst [vmem:[#allocation2 + $0x28] sm:$0xff] %v136
    %150 = vst [vmem:[#allocation2 + $0x30] sm:$0xff] %v139
    %151 = vst [vmem:[#allocation2 + $0x38] sm:$0xff] %v142
    %v152 = vld [vmem:[%s4] sm:$0xff]
    %v153 = vld [vmem:[%s4 + $0x8] sm:$0xff]
    %v154 = vld [vmem:[%s4 + $0x10] sm:$0xff]
    %v155 = vld [vmem:[%s4 + $0x18] sm:$0xff]
    %v156 = vld [vmem:[%s6] sm:$0x1]
    %v158 = vperm.slane %v156, 0
    %160 = vmatpush.msra.mxu0 0.0
    %161 = vmatpush.msra.mxu0 0.0
    %162 = vmatpush.msra.mxu0 0.0
    %163 = vmatpush.msra.mxu0 0.0
    %164 = vmatpush.msra.mxu0 0.0
    %165 = vmatpush.msra.mxu0 0.0
    %166 = vmatpush.msra.mxu0 0.0
    %167 = vmatpush.msra.mxu0 0.0
    %168 = vmatpush.msra.mxu0 0.0
    %169 = vmatpush.msra.mxu0 0.0
    %170 = vmatpush.msra.mxu0 0.0
    %171 = vmatpush.msra.mxu0 0.0
    %172 = vmatpush.msra.mxu0 %v155
    %173 = vmatpush.msra.mxu0 %v154
    %174 = vmatpush.msra.mxu0 %v153
    %175 = vmatpush.msra.mxu0 %v152
    %176 = vmatmul.f32.gmra.mxu0 %v80
    %v177 = vpop.f32.mrf.mxu0
    %v178 = vadd.f32 %v158, %v177
    %179 = vmatmul.f32.gmra.mxu0 %v83
    %v180 = vpop.f32.mrf.mxu0
    %v181 = vadd.f32 %v158, %v180
    %182 = vmatmul.f32.gmra.mxu0 %v86
    %v183 = vpop.f32.mrf.mxu0
    %v184 = vadd.f32 %v158, %v183
    %185 = vmatmul.f32.gmra.mxu0 %v89
    %v186 = vpop.f32.mrf.mxu0
    %v187 = vadd.f32 %v158, %v186
    %188 = vmatmul.f32.gmra.mxu0 %v92
    %v189 = vpop.f32.mrf.mxu0
    %v190 = vadd.f32 %v158, %v189
    %191 = vmatmul.f32.gmra.mxu0 %v95
    %v192 = vpop.f32.mrf.mxu0
    %v193 = vadd.f32 %v158, %v192
    %194 = vmatmul.f32.gmra.mxu0 %v98
    %v195 = vpop.f32.mrf.mxu0
    %v196 = vadd.f32 %v158, %v195
    %197 = vmatmul.f32.gmra.mxu0 %v101
    %v198 = vpop.f32.mrf.mxu0
    %v199 = vadd.f32 %v158, %v198
    %200 = vdwg.mxu0
    %201 = vst [vmem:[#allocation3] sm:$0xff] %v178
    %202 = vst [vmem:[#allocation3 + $0x8] sm:$0xff] %v181
    %203 = vst [vmem:[#allocation3 + $0x10] sm:$0xff] %v184
    %204 = vst [vmem:[#allocation3 + $0x18] sm:$0xff] %v187
    %205 = vst [vmem:[#allocation3 + $0x20] sm:$0xff] %v190
    %206 = vst [vmem:[#allocation3 + $0x28] sm:$0xff] %v193
    %207 = vst [vmem:[#allocation3 + $0x30] sm:$0xff] %v196
    %208 = vst [vmem:[#allocation3 + $0x38] sm:$0xff] %v199
    %v209 = vld [vmem:[#allocation2] sm:$0xff]
    %v210 = vld [vmem:[%s2] sm:$0xff]
    %v211 = vld [vmem:[%s2 + $0x8] sm:$0xff]
    %v212 = vld [vmem:[%s2 + $0x10] sm:$0xff]
    %v213 = vld [vmem:[%s2 + $0x18] sm:$0xff]
    %v215 = vsel %vm78, 0.0, 0
    %217 = vmatpush.msra.mxu0 0.0
    %218 = vmatpush.msra.mxu0 0.0
    %219 = vmatpush.msra.mxu0 0.0
    %220 = vmatpush.msra.mxu0 0.0
    %221 = vmatpush.msra.mxu0 0.0
    %222 = vmatpush.msra.mxu0 0.0
    %223 = vmatpush.msra.mxu0 0.0
    %224 = vmatpush.msra.mxu0 0.0
    %225 = vmatpush.msra.mxu0 0.0
    %226 = vmatpush.msra.mxu0 0.0
    %227 = vmatpush.msra.mxu0 0.0
    %228 = vmatpush.msra.mxu0 0.0
    %229 = vmatpush.msra.mxu0 %v213
    %230 = vmatpush.msra.mxu0 %v212
    %231 = vmatpush.msra.mxu0 %v211
    %232 = vmatpush.msra.mxu0 %v210
    %233 = vmatmul.f32.gmra.mxu0 %v215
    %v234 = vpop.f32.mrf.mxu0
    %v235 = vadd.f32 0.0, %v234
    %236 = vdwg.mxu0
    %v237 = vadd.f32 %v209, %v235
    %v238 = vxor.u32 %v237, 2147483648
    %v239 = vmul.f32 %v238, 1.442695
    %v240 = vpow.pop %v239
    %v241 = vadd.f32 %v240, 1.0
    %v242 = vrcp.pop %v241
    %v243 = vmul.f32 %v241, %v242
    %v244 = vsub.f32 1.0, %v243
    %v245 = vmul.f32 %v242, %v244
    %v246 = vadd.f32 %v242, %v245
    %vm247 = vweird.f32 %v241
    %vm248 = vweird.f32 %v242
    %vm249 = vmor %vm247, %vm248
    %v250 = vsel %vm249, %v242, %v246
    %v251 = vand.u32 2147483647, %v241
    %vm252 = vcmp.eq.f32.partialorder %v251, 8.507059e+37
    %v253 = vand.u32 %v241, 2147483648
    %v254 = vor.u32 1.1754944e-38, %v253
    %v255 = vsel %vm252, %v254, %v250
    %v256 = vmul.f32 1.0, %v255
    %v257 = vtanh.pop %v237
    %v258 = vmul.f32 %v256, 0.0
    %260 = vrot.lane.b32.xlu0 %v257, 64
    %v261 = vpop.permute.xlu0 %260
    %v263 = vmul.f32 %v256, %v261
    %265 = vrot.lane.b32.xlu0 %v263, 32
    %v266 = vpop.permute.xlu0 %265
    %v268 = vadd.f32 %v258, %v266
    %v269 = vtanh.pop %v268
    %271 = vrot.lane.b32.xlu0 %v269, 64
    %v272 = vpop.permute.xlu0 %271
    %v274 = vmul.f32 %v256, %v272
    %s275 = scalar_lea.vmem [#allocation3], 56
    %v276 = vld [vmem:[%s275] sm:$0xff]
    %v277 = vld [vmem:[#allocation6] sm:$0xff]
    %v278 = vld [vmem:[#allocation6 + $0x8] sm:$0xff]
    %v279 = vld [vmem:[#allocation6 + $0x10] sm:$0xff]
    %v280 = vld [vmem:[#allocation6 + $0x18] sm:$0xff]
    %281 = vmatpush.msra.mxu0 0.0
    %282 = vmatpush.msra.mxu0 0.0
    %283 = vmatpush.msra.mxu0 0.0
    %284 = vmatpush.msra.mxu0 0.0
    %285 = vmatpush.msra.mxu0 0.0
    %286 = vmatpush.msra.mxu0 0.0
    %287 = vmatpush.msra.mxu0 0.0
    %288 = vmatpush.msra.mxu0 0.0
    %289 = vmatpush.msra.mxu0 0.0
    %290 = vmatpush.msra.mxu0 0.0
    %291 = vmatpush.msra.mxu0 0.0
    %292 = vmatpush.msra.mxu0 0.0
    %293 = vmatpush.msra.mxu0 %v280
    %294 = vmatpush.msra.mxu0 %v279
    %295 = vmatpush.msra.mxu0 %v278
    %296 = vmatpush.msra.mxu0 %v277
    %297 = vmatmul.f32.gmra.mxu0 %v215
    %v298 = vpop.f32.mrf.mxu0
    %v299 = vadd.f32 0.0, %v298
    %300 = vdwg.mxu0
    %v301 = vadd.f32 %v276, %v299
    %v302 = vxor.u32 %v301, 2147483648
    %v303 = vmul.f32 %v302, 1.442695
    %v304 = vpow.pop %v303
    %v305 = vadd.f32 %v304, 1.0
    %v306 = vrcp.pop %v305
    %v307 = vmul.f32 %v305, %v306
    %v308 = vsub.f32 1.0, %v307
    %v309 = vmul.f32 %v306, %v308
    %v310 = vadd.f32 %v306, %v309
    %vm311 = vweird.f32 %v305
    %vm312 = vweird.f32 %v306
    %vm313 = vmor %vm311, %vm312
    %v314 = vsel %vm313, %v306, %v310
    %v315 = vand.u32 2147483647, %v305
    %vm316 = vcmp.eq.f32.partialorder %v315, 8.507059e+37
    %v317 = vand.u32 %v305, 2147483648
    %v318 = vor.u32 1.1754944e-38, %v317
    %v319 = vsel %vm316, %v318, %v314
    %v320 = vmul.f32 1.0, %v319
    %v321 = vtanh.pop %v301
    %v322 = vmul.f32 %v320, 0.0
    %324 = vrot.lane.b32.xlu0 %v321, 64
    %v325 = vpop.permute.xlu0 %324
    %v327 = vmul.f32 %v320, %v325
    %329 = vrot.lane.b32.xlu0 %v327, 32
    %v330 = vpop.permute.xlu0 %329
    %v332 = vadd.f32 %v322, %v330
    %v333 = vtanh.pop %v332
    %335 = vrot.lane.b32.xlu0 %v333, 64
    %v336 = vpop.permute.xlu0 %335
    %v338 = vmul.f32 %v320, %v336
    %340 = vrot.lane.b32.xlu0 %v274, 32
    %v341 = vpop.permute.xlu0 %340
    %343 = vst.msk [vmem:[#allocation4] sm:$0xff] %vm78, %v341
    %345 = vrot.lane.b32.xlu0 %v338, 32
    %v346 = vpop.permute.xlu0 %345
    %s348 = scalar_lea.vmem [#allocation5], 56
    %349 = vst.msk [vmem:[%s348] sm:$0xff] %vm78, %v346
    %s350 = scalar_lea.vmem [#allocation2], 8
    %v351 = vld [vmem:[%s350] sm:$0xff]
    %v352 = vld [vmem:[%s2] sm:$0xff]
    %v353 = vld [vmem:[%s2 + $0x8] sm:$0xff]
    %v354 = vld [vmem:[%s2 + $0x10] sm:$0xff]
    %v355 = vld [vmem:[%s2 + $0x18] sm:$0xff]
    %v356 = vsel %vm78, %v341, 0
    %358 = vmatpush.msra.mxu0 0.0
    %359 = vmatpush.msra.mxu0 0.0
    %360 = vmatpush.msra.mxu0 0.0
    %361 = vmatpush.msra.mxu0 0.0
    %362 = vmatpush.msra.mxu0 0.0
    %363 = vmatpush.msra.mxu0 0.0
    %364 = vmatpush.msra.mxu0 0.0
    %365 = vmatpush.msra.mxu0 0.0
    %366 = vmatpush.msra.mxu0 0.0
    %367 = vmatpush.msra.mxu0 0.0
    %368 = vmatpush.msra.mxu0 0.0
    %369 = vmatpush.msra.mxu0 0.0
    %370 = vmatpush.msra.mxu0 %v355
    %371 = vmatpush.msra.mxu0 %v354
    %372 = vmatpush.msra.mxu0 %v353
    %373 = vmatpush.msra.mxu0 %v352
    %374 = vmatmul.f32.gmra.mxu0 %v356
    %v375 = vpop.f32.mrf.mxu0
    %v376 = vadd.f32 0.0, %v375
    %377 = vdwg.mxu0
    %v378 = vadd.f32 %v351, %v376
    %v379 = vxor.u32 %v378, 2147483648
    %v380 = vmul.f32 %v379, 1.442695
    %v381 = vpow.pop %v380
    %v382 = vadd.f32 %v381, 1.0
    %v383 = vrcp.pop %v382
    %v384 = vmul.f32 %v382, %v383
    %v385 = vsub.f32 1.0, %v384
    %v386 = vmul.f32 %v383, %v385
    %v387 = vadd.f32 %v383, %v386
    %vm388 = vweird.f32 %v382
    %vm389 = vweird.f32 %v383
    %vm390 = vmor %vm388, %vm389
    %v391 = vsel %vm390, %v383, %v387
    %v392 = vand.u32 2147483647, %v382
    %vm393 = vcmp.eq.f32.partialorder %v392, 8.507059e+37
    %v394 = vand.u32 %v382, 2147483648
    %v395 = vor.u32 1.1754944e-38, %v394
    %v396 = vsel %vm393, %v395, %v391
    %v397 = vmul.f32 1.0, %v396
    %v398 = vtanh.pop %v378
    %v399 = vmul.f32 %v397, %v268
    %401 = vrot.lane.b32.xlu0 %v398, 64
    %v402 = vpop.permute.xlu0 %401
    %v404 = vmul.f32 %v397, %v402
    %406 = vrot.lane.b32.xlu0 %v404, 32
    %v407 = vpop.permute.xlu0 %406
    %v409 = vadd.f32 %v399, %v407
    %v410 = vtanh.pop %v409
    %412 = vrot.lane.b32.xlu0 %v410, 64
    %v413 = vpop.permute.xlu0 %412
    %v415 = vmul.f32 %v397, %v413
    %s416 = scalar_lea.vmem [#allocation3], 48
    %v417 = vld [vmem:[%s416] sm:$0xff]
    %v418 = vld [vmem:[#allocation6] sm:$0xff]
    %v419 = vld [vmem:[#allocation6 + $0x8] sm:$0xff]
    %v420 = vld [vmem:[#allocation6 + $0x10] sm:$0xff]
    %v421 = vld [vmem:[#allocation6 + $0x18] sm:$0xff]
    %v422 = vsel %vm78, %v346, 0
    %424 = vmatpush.msra.mxu0 0.0
    %425 = vmatpush.msra.mxu0 0.0
    %426 = vmatpush.msra.mxu0 0.0
    %427 = vmatpush.msra.mxu0 0.0
    %428 = vmatpush.msra.mxu0 0.0
    %429 = vmatpush.msra.mxu0 0.0
    %430 = vmatpush.msra.mxu0 0.0
    %431 = vmatpush.msra.mxu0 0.0
    %432 = vmatpush.msra.mxu0 0.0
    %433 = vmatpush.msra.mxu0 0.0
    %434 = vmatpush.msra.mxu0 0.0
    %435 = vmatpush.msra.mxu0 0.0
    %436 = vmatpush.msra.mxu0 %v421
    %437 = vmatpush.msra.mxu0 %v420
    %438 = vmatpush.msra.mxu0 %v419
    %439 = vmatpush.msra.mxu0 %v418
    %440 = vmatmul.f32.gmra.mxu0 %v422
    %v441 = vpop.f32.mrf.mxu0
    %v442 = vadd.f32 0.0, %v441
    %443 = vdwg.mxu0
    %v444 = vadd.f32 %v417, %v442
    %v445 = vxor.u32 %v444, 2147483648
    %v446 = vmul.f32 %v445, 1.442695
    %v447 = vpow.pop %v446
    %v448 = vadd.f32 %v447, 1.0
    %v449 = vrcp.pop %v448
    %v450 = vmul.f32 %v448, %v449
    %v451 = vsub.f32 1.0, %v450
    %v452 = vmul.f32 %v449, %v451
    %v453 = vadd.f32 %v449, %v452
    %vm454 = vweird.f32 %v448
    %vm455 = vweird.f32 %v449
    %vm456 = vmor %vm454, %vm455
    %v457 = vsel %vm456, %v449, %v453
    %v458 = vand.u32 2147483647, %v448
    %vm459 = vcmp.eq.f32.partialorder %v458, 8.507059e+37
    %v460 = vand.u32 %v448, 2147483648
    %v461 = vor.u32 1.1754944e-38, %v460
    %v462 = vsel %vm459, %v461, %v457
    %v463 = vmul.f32 1.0, %v462
    %v464 = vtanh.pop %v444
    %v465 = vmul.f32 %v463, %v332
    %467 = vrot.lane.b32.xlu0 %v464, 64
    %v468 = vpop.permute.xlu0 %467
    %v470 = vmul.f32 %v463, %v468
    %472 = vrot.lane.b32.xlu0 %v470, 32
    %v473 = vpop.permute.xlu0 %472
    %v475 = vadd.f32 %v465, %v473
    %v476 = vtanh.pop %v475
    %478 = vrot.lane.b32.xlu0 %v476, 64
    %v479 = vpop.permute.xlu0 %478
    %v481 = vmul.f32 %v463, %v479
    %483 = vrot.lane.b32.xlu0 %v415, 32
    %v484 = vpop.permute.xlu0 %483
    %s486 = scalar_lea.vmem [#allocation4], 8
    %487 = vst.msk [vmem:[%s486] sm:$0xff] %vm78, %v484
    %489 = vrot.lane.b32.xlu0 %v481, 32
    %v490 = vpop.permute.xlu0 %489
    %s492 = scalar_lea.vmem [#allocation5], 48
    %493 = vst.msk [vmem:[%s492] sm:$0xff] %vm78, %v490
    %s494 = scalar_lea.vmem [#allocation2], 16
    %v495 = vld [vmem:[%s494] sm:$0xff]
    %v496 = vld [vmem:[%s2] sm:$0xff]
    %v497 = vld [vmem:[%s2 + $0x8] sm:$0xff]
    %v498 = vld [vmem:[%s2 + $0x10] sm:$0xff]
    %v499 = vld [vmem:[%s2 + $0x18] sm:$0xff]
    %v500 = vsel %vm78, %v484, 0
    %502 = vmatpush.msra.mxu0 0.0
    %503 = vmatpush.msra.mxu0 0.0
    %504 = vmatpush.msra.mxu0 0.0
    %505 = vmatpush.msra.mxu0 0.0
    %506 = vmatpush.msra.mxu0 0.0
    %507 = vmatpush.msra.mxu0 0.0
    %508 = vmatpush.msra.mxu0 0.0
    %509 = vmatpush.msra.mxu0 0.0
    %510 = vmatpush.msra.mxu0 0.0
    %511 = vmatpush.msra.mxu0 0.0
    %512 = vmatpush.msra.mxu0 0.0
    %513 = vmatpush.msra.mxu0 0.0
    %514 = vmatpush.msra.mxu0 %v499
    %515 = vmatpush.msra.mxu0 %v498
    %516 = vmatpush.msra.mxu0 %v497
    %517 = vmatpush.msra.mxu0 %v496
    %518 = vmatmul.f32.gmra.mxu0 %v500
    %v519 = vpop.f32.mrf.mxu0
    %v520 = vadd.f32 0.0, %v519
    %521 = vdwg.mxu0
    %v522 = vadd.f32 %v495, %v520
    %v523 = vxor.u32 %v522, 2147483648
    %v524 = vmul.f32 %v523, 1.442695
    %v525 = vpow.pop %v524
    %v526 = vadd.f32 %v525, 1.0
    %v527 = vrcp.pop %v526
    %v528 = vmul.f32 %v526, %v527
    %v529 = vsub.f32 1.0, %v528
    %v530 = vmul.f32 %v527, %v529
    %v531 = vadd.f32 %v527, %v530
    %vm532 = vweird.f32 %v526
    %vm533 = vweird.f32 %v527
    %vm534 = vmor %vm532, %vm533
    %v535 = vsel %vm534, %v527, %v531
    %v536 = vand.u32 2147483647, %v526
    %vm537 = vcmp.eq.f32.partialorder %v536, 8.507059e+37
    %v538 = vand.u32 %v526, 2147483648
    %v539 = vor.u32 1.1754944e-38, %v538
    %v540 = vsel %vm537, %v539, %v535
    %v541 = vmul.f32 1.0, %v540
    %v542 = vtanh.pop %v522
    %v543 = vmul.f32 %v541, %v409
    %545 = vrot.lane.b32.xlu0 %v542, 64
    %v546 = vpop.permute.xlu0 %545
    %v548 = vmul.f32 %v541, %v546
    %550 = vrot.lane.b32.xlu0 %v548, 32
    %v551 = vpop.permute.xlu0 %550
    %v553 = vadd.f32 %v543, %v551
    %v554 = vtanh.pop %v553
    %556 = vrot.lane.b32.xlu0 %v554, 64
    %v557 = vpop.permute.xlu0 %556
    %v559 = vmul.f32 %v541, %v557
    %s560 = scalar_lea.vmem [#allocation3], 40
    %v561 = vld [vmem:[%s560] sm:$0xff]
    %v562 = vld [vmem:[#allocation6] sm:$0xff]
    %v563 = vld [vmem:[#allocation6 + $0x8] sm:$0xff]
    %v564 = vld [vmem:[#allocation6 + $0x10] sm:$0xff]
    %v565 = vld [vmem:[#allocation6 + $0x18] sm:$0xff]
    %v566 = vsel %vm78, %v490, 0
    %568 = vmatpush.msra.mxu0 0.0
    %569 = vmatpush.msra.mxu0 0.0
    %570 = vmatpush.msra.mxu0 0.0
    %571 = vmatpush.msra.mxu0 0.0
    %572 = vmatpush.msra.mxu0 0.0
    %573 = vmatpush.msra.mxu0 0.0
    %574 = vmatpush.msra.mxu0 0.0
    %575 = vmatpush.msra.mxu0 0.0
    %576 = vmatpush.msra.mxu0 0.0
    %577 = vmatpush.msra.mxu0 0.0
    %578 = vmatpush.msra.mxu0 0.0
    %579 = vmatpush.msra.mxu0 0.0
    %580 = vmatpush.msra.mxu0 %v565
    %581 = vmatpush.msra.mxu0 %v564
    %582 = vmatpush.msra.mxu0 %v563
    %583 = vmatpush.msra.mxu0 %v562
    %584 = vmatmul.f32.gmra.mxu0 %v566
    %v585 = vpop.f32.mrf.mxu0
    %v586 = vadd.f32 0.0, %v585
    %587 = vdwg.mxu0
    %v588 = vadd.f32 %v561, %v586
    %v589 = vxor.u32 %v588, 2147483648
    %v590 = vmul.f32 %v589, 1.442695
    %v591 = vpow.pop %v590
    %v592 = vadd.f32 %v591, 1.0
    %v593 = vrcp.pop %v592
    %v594 = vmul.f32 %v592, %v593
    %v595 = vsub.f32 1.0, %v594
    %v596 = vmul.f32 %v593, %v595
    %v597 = vadd.f32 %v593, %v596
    %vm598 = vweird.f32 %v592
    %vm599 = vweird.f32 %v593
    %vm600 = vmor %vm598, %vm599
    %v601 = vsel %vm600, %v593, %v597
    %v602 = vand.u32 2147483647, %v592
    %vm603 = vcmp.eq.f32.partialorder %v602, 8.507059e+37
    %v604 = vand.u32 %v592, 2147483648
    %v605 = vor.u32 1.1754944e-38, %v604
    %v606 = vsel %vm603, %v605, %v601
    %v607 = vmul.f32 1.0, %v606
    %v608 = vtanh.pop %v588
    %v609 = vmul.f32 %v607, %v475
    %611 = vrot.lane.b32.xlu0 %v608, 64
    %v612 = vpop.permute.xlu0 %611
    %v614 = vmul.f32 %v607, %v612
    %616 = vrot.lane.b32.xlu0 %v614, 32
    %v617 = vpop.permute.xlu0 %616
    %v619 = vadd.f32 %v609, %v617
    %v620 = vtanh.pop %v619
    %622 = vrot.lane.b32.xlu0 %v620, 64
    %v623 = vpop.permute.xlu0 %622
    %v625 = vmul.f32 %v607, %v623
    %627 = vrot.lane.b32.xlu0 %v559, 32
    %v628 = vpop.permute.xlu0 %627
    %s630 = scalar_lea.vmem [#allocation4], 16
    %631 = vst.msk [vmem:[%s630] sm:$0xff] %vm78, %v628
    %633 = vrot.lane.b32.xlu0 %v625, 32
    %v634 = vpop.permute.xlu0 %633
    %s636 = scalar_lea.vmem [#allocation5], 40
    %637 = vst.msk [vmem:[%s636] sm:$0xff] %vm78, %v634
    %s638 = scalar_lea.vmem [#allocation2], 24
    %v639 = vld [vmem:[%s638] sm:$0xff]
    %v640 = vld [vmem:[%s2] sm:$0xff]
    %v641 = vld [vmem:[%s2 + $0x8] sm:$0xff]
    %v642 = vld [vmem:[%s2 + $0x10] sm:$0xff]
    %v643 = vld [vmem:[%s2 + $0x18] sm:$0xff]
    %v644 = vsel %vm78, %v628, 0
    %646 = vmatpush.msra.mxu0 0.0
    %647 = vmatpush.msra.mxu0 0.0
    %648 = vmatpush.msra.mxu0 0.0
    %649 = vmatpush.msra.mxu0 0.0
    %650 = vmatpush.msra.mxu0 0.0
    %651 = vmatpush.msra.mxu0 0.0
    %652 = vmatpush.msra.mxu0 0.0
    %653 = vmatpush.msra.mxu0 0.0
    %654 = vmatpush.msra.mxu0 0.0
    %655 = vmatpush.msra.mxu0 0.0
    %656 = vmatpush.msra.mxu0 0.0
    %657 = vmatpush.msra.mxu0 0.0
    %658 = vmatpush.msra.mxu0 %v643
    %659 = vmatpush.msra.mxu0 %v642
    %660 = vmatpush.msra.mxu0 %v641
    %661 = vmatpush.msra.mxu0 %v640
    %662 = vmatmul.f32.gmra.mxu0 %v644
    %v663 = vpop.f32.mrf.mxu0
    %v664 = vadd.f32 0.0, %v663
    %665 = vdwg.mxu0
    %v666 = vadd.f32 %v639, %v664
    %v667 = vxor.u32 %v666, 2147483648
    %v668 = vmul.f32 %v667, 1.442695
    %v669 = vpow.pop %v668
    %v670 = vadd.f32 %v669, 1.0
    %v671 = vrcp.pop %v670
    %v672 = vmul.f32 %v670, %v671
    %v673 = vsub.f32 1.0, %v672
    %v674 = vmul.f32 %v671, %v673
    %v675 = vadd.f32 %v671, %v674
    %vm676 = vweird.f32 %v670
    %vm677 = vweird.f32 %v671
    %vm678 = vmor %vm676, %vm677
    %v679 = vsel %vm678, %v671, %v675
    %v680 = vand.u32 2147483647, %v670
    %vm681 = vcmp.eq.f32.partialorder %v680, 8.507059e+37
    %v682 = vand.u32 %v670, 2147483648
    %v683 = vor.u32 1.1754944e-38, %v682
    %v684 = vsel %vm681, %v683, %v679
    %v685 = vmul.f32 1.0, %v684
    %v686 = vtanh.pop %v666
    %v687 = vmul.f32 %v685, %v553
    %689 = vrot.lane.b32.xlu0 %v686, 64
    %v690 = vpop.permute.xlu0 %689
    %v692 = vmul.f32 %v685, %v690
    %694 = vrot.lane.b32.xlu0 %v692, 32
    %v695 = vpop.permute.xlu0 %694
    %v697 = vadd.f32 %v687, %v695
    %v698 = vtanh.pop %v697
    %700 = vrot.lane.b32.xlu0 %v698, 64
    %v701 = vpop.permute.xlu0 %700
    %v703 = vmul.f32 %v685, %v701
    %s704 = scalar_lea.vmem [#allocation3], 32
    %v705 = vld [vmem:[%s704] sm:$0xff]
    %v706 = vld [vmem:[#allocation6] sm:$0xff]
    %v707 = vld [vmem:[#allocation6 + $0x8] sm:$0xff]
    %v708 = vld [vmem:[#allocation6 + $0x10] sm:$0xff]
    %v709 = vld [vmem:[#allocation6 + $0x18] sm:$0xff]
    %v710 = vsel %vm78, %v634, 0
    %712 = vmatpush.msra.mxu0 0.0
    %713 = vmatpush.msra.mxu0 0.0
    %714 = vmatpush.msra.mxu0 0.0
    %715 = vmatpush.msra.mxu0 0.0
    %716 = vmatpush.msra.mxu0 0.0
    %717 = vmatpush.msra.mxu0 0.0
    %718 = vmatpush.msra.mxu0 0.0
    %719 = vmatpush.msra.mxu0 0.0
    %720 = vmatpush.msra.mxu0 0.0
    %721 = vmatpush.msra.mxu0 0.0
    %722 = vmatpush.msra.mxu0 0.0
    %723 = vmatpush.msra.mxu0 0.0
    %724 = vmatpush.msra.mxu0 %v709
    %725 = vmatpush.msra.mxu0 %v708
    %726 = vmatpush.msra.mxu0 %v707
    %727 = vmatpush.msra.mxu0 %v706
    %728 = vmatmul.f32.gmra.mxu0 %v710
    %v729 = vpop.f32.mrf.mxu0
    %v730 = vadd.f32 0.0, %v729
    %731 = vdwg.mxu0
    %v732 = vadd.f32 %v705, %v730
    %v733 = vxor.u32 %v732, 2147483648
    %v734 = vmul.f32 %v733, 1.442695
    %v735 = vpow.pop %v734
    %v736 = vadd.f32 %v735, 1.0
    %v737 = vrcp.pop %v736
    %v738 = vmul.f32 %v736, %v737
    %v739 = vsub.f32 1.0, %v738
    %v740 = vmul.f32 %v737, %v739
    %v741 = vadd.f32 %v737, %v740
    %vm742 = vweird.f32 %v736
    %vm743 = vweird.f32 %v737
    %vm744 = vmor %vm742, %vm743
    %v745 = vsel %vm744, %v737, %v741
    %v746 = vand.u32 2147483647, %v736
    %vm747 = vcmp.eq.f32.partialorder %v746, 8.507059e+37
    %v748 = vand.u32 %v736, 2147483648
    %v749 = vor.u32 1.1754944e-38, %v748
    %v750 = vsel %vm747, %v749, %v745
    %v751 = vmul.f32 1.0, %v750
    %v752 = vtanh.pop %v732
    %v753 = vmul.f32 %v751, %v619
    %755 = vrot.lane.b32.xlu0 %v752, 64
    %v756 = vpop.permute.xlu0 %755
    %v758 = vmul.f32 %v751, %v756
    %760 = vrot.lane.b32.xlu0 %v758, 32
    %v761 = vpop.permute.xlu0 %760
    %v763 = vadd.f32 %v753, %v761
    %v764 = vtanh.pop %v763
    %766 = vrot.lane.b32.xlu0 %v764, 64
    %v767 = vpop.permute.xlu0 %766
    %v769 = vmul.f32 %v751, %v767
    %771 = vrot.lane.b32.xlu0 %v703, 32
    %v772 = vpop.permute.xlu0 %771
    %s774 = scalar_lea.vmem [#allocation4], 24
    %775 = vst.msk [vmem:[%s774] sm:$0xff] %vm78, %v772
    %777 = vrot.lane.b32.xlu0 %v769, 32
    %v778 = vpop.permute.xlu0 %777
    %s780 = scalar_lea.vmem [#allocation5], 32
    %781 = vst.msk [vmem:[%s780] sm:$0xff] %vm78, %v778
    %s782 = scalar_lea.vmem [#allocation2], 32
    %v783 = vld [vmem:[%s782] sm:$0xff]
    %v784 = vld [vmem:[%s2] sm:$0xff]
    %v785 = vld [vmem:[%s2 + $0x8] sm:$0xff]
    %v786 = vld [vmem:[%s2 + $0x10] sm:$0xff]
    %v787 = vld [vmem:[%s2 + $0x18] sm:$0xff]
    %v788 = vsel %vm78, %v772, 0
    %790 = vmatpush.msra.mxu0 0.0
    %791 = vmatpush.msra.mxu0 0.0
    %792 = vmatpush.msra.mxu0 0.0
    %793 = vmatpush.msra.mxu0 0.0
    %794 = vmatpush.msra.mxu0 0.0
    %795 = vmatpush.msra.mxu0 0.0
    %796 = vmatpush.msra.mxu0 0.0
    %797 = vmatpush.msra.mxu0 0.0
    %798 = vmatpush.msra.mxu0 0.0
    %799 = vmatpush.msra.mxu0 0.0
    %800 = vmatpush.msra.mxu0 0.0
    %801 = vmatpush.msra.mxu0 0.0
    %802 = vmatpush.msra.mxu0 %v787
    %803 = vmatpush.msra.mxu0 %v786
    %804 = vmatpush.msra.mxu0 %v785
    %805 = vmatpush.msra.mxu0 %v784
    %806 = vmatmul.f32.gmra.mxu0 %v788
    %v807 = vpop.f32.mrf.mxu0
    %v808 = vadd.f32 0.0, %v807
    %809 = vdwg.mxu0
    %v810 = vadd.f32 %v783, %v808
    %v811 = vxor.u32 %v810, 2147483648
    %v812 = vmul.f32 %v811, 1.442695
    %v813 = vpow.pop %v812
    %v814 = vadd.f32 %v813, 1.0
    %v815 = vrcp.pop %v814
    %v816 = vmul.f32 %v814, %v815
    %v817 = vsub.f32 1.0, %v816
    %v818 = vmul.f32 %v815, %v817
    %v819 = vadd.f32 %v815, %v818
    %vm820 = vweird.f32 %v814
    %vm821 = vweird.f32 %v815
    %vm822 = vmor %vm820, %vm821
    %v823 = vsel %vm822, %v815, %v819
    %v824 = vand.u32 2147483647, %v814
    %vm825 = vcmp.eq.f32.partialorder %v824, 8.507059e+37
    %v826 = vand.u32 %v814, 2147483648
    %v827 = vor.u32 1.1754944e-38, %v826
    %v828 = vsel %vm825, %v827, %v823
    %v829 = vmul.f32 1.0, %v828
    %v830 = vtanh.pop %v810
    %v831 = vmul.f32 %v829, %v697
    %833 = vrot.lane.b32.xlu0 %v830, 64
    %v834 = vpop.permute.xlu0 %833
    %v836 = vmul.f32 %v829, %v834
    %838 = vrot.lane.b32.xlu0 %v836, 32
    %v839 = vpop.permute.xlu0 %838
    %v841 = vadd.f32 %v831, %v839
    %v842 = vtanh.pop %v841
    %844 = vrot.lane.b32.xlu0 %v842, 64
    %v845 = vpop.permute.xlu0 %844
    %v847 = vmul.f32 %v829, %v845
    %s848 = scalar_lea.vmem [#allocation3], 24
    %v849 = vld [vmem:[%s848] sm:$0xff]
    %v850 = vld [vmem:[#allocation6] sm:$0xff]
    %v851 = vld [vmem:[#allocation6 + $0x8] sm:$0xff]
    %v852 = vld [vmem:[#allocation6 + $0x10] sm:$0xff]
    %v853 = vld [vmem:[#allocation6 + $0x18] sm:$0xff]
    %v854 = vsel %vm78, %v778, 0
    %856 = vmatpush.msra.mxu0 0.0
    %857 = vmatpush.msra.mxu0 0.0
    %858 = vmatpush.msra.mxu0 0.0
    %859 = vmatpush.msra.mxu0 0.0
    %860 = vmatpush.msra.mxu0 0.0
    %861 = vmatpush.msra.mxu0 0.0
    %862 = vmatpush.msra.mxu0 0.0
    %863 = vmatpush.msra.mxu0 0.0
    %864 = vmatpush.msra.mxu0 0.0
    %865 = vmatpush.msra.mxu0 0.0
    %866 = vmatpush.msra.mxu0 0.0
    %867 = vmatpush.msra.mxu0 0.0
    %868 = vmatpush.msra.mxu0 %v853
    %869 = vmatpush.msra.mxu0 %v852
    %870 = vmatpush.msra.mxu0 %v851
    %871 = vmatpush.msra.mxu0 %v850
    %872 = vmatmul.f32.gmra.mxu0 %v854
    %v873 = vpop.f32.mrf.mxu0
    %v874 = vadd.f32 0.0, %v873
    %875 = vdwg.mxu0
    %v876 = vadd.f32 %v849, %v874
    %v877 = vxor.u32 %v876, 2147483648
    %v878 = vmul.f32 %v877, 1.442695
    %v879 = vpow.pop %v878
    %v880 = vadd.f32 %v879, 1.0
    %v881 = vrcp.pop %v880
    %v882 = vmul.f32 %v880, %v881
    %v883 = vsub.f32 1.0, %v882
    %v884 = vmul.f32 %v881, %v883
    %v885 = vadd.f32 %v881, %v884
    %vm886 = vweird.f32 %v880
    %vm887 = vweird.f32 %v881
    %vm888 = vmor %vm886, %vm887
    %v889 = vsel %vm888, %v881, %v885
    %v890 = vand.u32 2147483647, %v880
    %vm891 = vcmp.eq.f32.partialorder %v890, 8.507059e+37
    %v892 = vand.u32 %v880, 2147483648
    %v893 = vor.u32 1.1754944e-38, %v892
    %v894 = vsel %vm891, %v893, %v889
    %v895 = vmul.f32 1.0, %v894
    %v896 = vtanh.pop %v876
    %v897 = vmul.f32 %v895, %v763
    %899 = vrot.lane.b32.xlu0 %v896, 64
    %v900 = vpop.permute.xlu0 %899
    %v902 = vmul.f32 %v895, %v900
    %904 = vrot.lane.b32.xlu0 %v902, 32
    %v905 = vpop.permute.xlu0 %904
    %v907 = vadd.f32 %v897, %v905
    %v908 = vtanh.pop %v907
    %910 = vrot.lane.b32.xlu0 %v908, 64
    %v911 = vpop.permute.xlu0 %910
    %v913 = vmul.f32 %v895, %v911
    %915 = vrot.lane.b32.xlu0 %v847, 32
    %v916 = vpop.permute.xlu0 %915
    %s918 = scalar_lea.vmem [#allocation4], 32
    %919 = vst.msk [vmem:[%s918] sm:$0xff] %vm78, %v916
    %921 = vrot.lane.b32.xlu0 %v913, 32
    %v922 = vpop.permute.xlu0 %921
    %s924 = scalar_lea.vmem [#allocation5], 24
    %925 = vst.msk [vmem:[%s924] sm:$0xff] %vm78, %v922
    %s926 = scalar_lea.vmem [#allocation2], 40
    %v927 = vld [vmem:[%s926] sm:$0xff]
    %v928 = vld [vmem:[%s2] sm:$0xff]
    %v929 = vld [vmem:[%s2 + $0x8] sm:$0xff]
    %v930 = vld [vmem:[%s2 + $0x10] sm:$0xff]
    %v931 = vld [vmem:[%s2 + $0x18] sm:$0xff]
    %v932 = vsel %vm78, %v916, 0
    %934 = vmatpush.msra.mxu0 0.0
    %935 = vmatpush.msra.mxu0 0.0
    %936 = vmatpush.msra.mxu0 0.0
    %937 = vmatpush.msra.mxu0 0.0
    %938 = vmatpush.msra.mxu0 0.0
    %939 = vmatpush.msra.mxu0 0.0
    %940 = vmatpush.msra.mxu0 0.0
    %941 = vmatpush.msra.mxu0 0.0
    %942 = vmatpush.msra.mxu0 0.0
    %943 = vmatpush.msra.mxu0 0.0
    %944 = vmatpush.msra.mxu0 0.0
    %945 = vmatpush.msra.mxu0 0.0
    %946 = vmatpush.msra.mxu0 %v931
    %947 = vmatpush.msra.mxu0 %v930
    %948 = vmatpush.msra.mxu0 %v929
    %949 = vmatpush.msra.mxu0 %v928
    %950 = vmatmul.f32.gmra.mxu0 %v932
    %v951 = vpop.f32.mrf.mxu0
    %v952 = vadd.f32 0.0, %v951
    %953 = vdwg.mxu0
    %v954 = vadd.f32 %v927, %v952
    %v955 = vxor.u32 %v954, 2147483648
    %v956 = vmul.f32 %v955, 1.442695
    %v957 = vpow.pop %v956
    %v958 = vadd.f32 %v957, 1.0
    %v959 = vrcp.pop %v958
    %v960 = vmul.f32 %v958, %v959
    %v961 = vsub.f32 1.0, %v960
    %v962 = vmul.f32 %v959, %v961
    %v963 = vadd.f32 %v959, %v962
    %vm964 = vweird.f32 %v958
    %vm965 = vweird.f32 %v959
    %vm966 = vmor %vm964, %vm965
    %v967 = vsel %vm966, %v959, %v963
    %v968 = vand.u32 2147483647, %v958
    %vm969 = vcmp.eq.f32.partialorder %v968, 8.507059e+37
    %v970 = vand.u32 %v958, 2147483648
    %v971 = vor.u32 1.1754944e-38, %v970
    %v972 = vsel %vm969, %v971, %v967
    %v973 = vmul.f32 1.0, %v972
    %v974 = vtanh.pop %v954
    %v975 = vmul.f32 %v973, %v841
    %977 = vrot.lane.b32.xlu0 %v974, 64
    %v978 = vpop.permute.xlu0 %977
    %v980 = vmul.f32 %v973, %v978
    %982 = vrot.lane.b32.xlu0 %v980, 32
    %v983 = vpop.permute.xlu0 %982
    %v985 = vadd.f32 %v975, %v983
    %v986 = vtanh.pop %v985
    %988 = vrot.lane.b32.xlu0 %v986, 64
    %v989 = vpop.permute.xlu0 %988
    %v991 = vmul.f32 %v973, %v989
    %s992 = scalar_lea.vmem [#allocation3], 16
    %v993 = vld [vmem:[%s992] sm:$0xff]
    %v994 = vld [vmem:[#allocation6] sm:$0xff]
    %v995 = vld [vmem:[#allocation6 + $0x8] sm:$0xff]
    %v996 = vld [vmem:[#allocation6 + $0x10] sm:$0xff]
    %v997 = vld [vmem:[#allocation6 + $0x18] sm:$0xff]
    %v998 = vsel %vm78, %v922, 0
    %1000 = vmatpush.msra.mxu0 0.0
    %1001 = vmatpush.msra.mxu0 0.0
    %1002 = vmatpush.msra.mxu0 0.0
    %1003 = vmatpush.msra.mxu0 0.0
    %1004 = vmatpush.msra.mxu0 0.0
    %1005 = vmatpush.msra.mxu0 0.0
    %1006 = vmatpush.msra.mxu0 0.0
    %1007 = vmatpush.msra.mxu0 0.0
    %1008 = vmatpush.msra.mxu0 0.0
    %1009 = vmatpush.msra.mxu0 0.0
    %1010 = vmatpush.msra.mxu0 0.0
    %1011 = vmatpush.msra.mxu0 0.0
    %1012 = vmatpush.msra.mxu0 %v997
    %1013 = vmatpush.msra.mxu0 %v996
    %1014 = vmatpush.msra.mxu0 %v995
    %1015 = vmatpush.msra.mxu0 %v994
    %1016 = vmatmul.f32.gmra.mxu0 %v998
    %v1017 = vpop.f32.mrf.mxu0
    %v1018 = vadd.f32 0.0, %v1017
    %1019 = vdwg.mxu0
    %v1020 = vadd.f32 %v993, %v1018
    %v1021 = vxor.u32 %v1020, 2147483648
    %v1022 = vmul.f32 %v1021, 1.442695
    %v1023 = vpow.pop %v1022
    %v1024 = vadd.f32 %v1023, 1.0
    %v1025 = vrcp.pop %v1024
    %v1026 = vmul.f32 %v1024, %v1025
    %v1027 = vsub.f32 1.0, %v1026
    %v1028 = vmul.f32 %v1025, %v1027
    %v1029 = vadd.f32 %v1025, %v1028
    %vm1030 = vweird.f32 %v1024
    %vm1031 = vweird.f32 %v1025
    %vm1032 = vmor %vm1030, %vm1031
    %v1033 = vsel %vm1032, %v1025, %v1029
    %v1034 = vand.u32 2147483647, %v1024
    %vm1035 = vcmp.eq.f32.partialorder %v1034, 8.507059e+37
    %v1036 = vand.u32 %v1024, 2147483648
    %v1037 = vor.u32 1.1754944e-38, %v1036
    %v1038 = vsel %vm1035, %v1037, %v1033
    %v1039 = vmul.f32 1.0, %v1038
    %v1040 = vtanh.pop %v1020
    %v1041 = vmul.f32 %v1039, %v907
    %1043 = vrot.lane.b32.xlu0 %v1040, 64
    %v1044 = vpop.permute.xlu0 %1043
    %v1046 = vmul.f32 %v1039, %v1044
    %1048 = vrot.lane.b32.xlu0 %v1046, 32
    %v1049 = vpop.permute.xlu0 %1048
    %v1051 = vadd.f32 %v1041, %v1049
    %v1052 = vtanh.pop %v1051
    %1054 = vrot.lane.b32.xlu0 %v1052, 64
    %v1055 = vpop.permute.xlu0 %1054
    %v1057 = vmul.f32 %v1039, %v1055
    %1059 = vrot.lane.b32.xlu0 %v991, 32
    %v1060 = vpop.permute.xlu0 %1059
    %s1062 = scalar_lea.vmem [#allocation4], 40
    %1063 = vst.msk [vmem:[%s1062] sm:$0xff] %vm78, %v1060
    %1065 = vrot.lane.b32.xlu0 %v1057, 32
    %v1066 = vpop.permute.xlu0 %1065
    %s1068 = scalar_lea.vmem [#allocation5], 16
    %1069 = vst.msk [vmem:[%s1068] sm:$0xff] %vm78, %v1066
    %s1070 = scalar_lea.vmem [#allocation2], 48
    %v1071 = vld [vmem:[%s1070] sm:$0xff]
    %v1072 = vld [vmem:[%s2] sm:$0xff]
    %v1073 = vld [vmem:[%s2 + $0x8] sm:$0xff]
    %v1074 = vld [vmem:[%s2 + $0x10] sm:$0xff]
    %v1075 = vld [vmem:[%s2 + $0x18] sm:$0xff]
    %v1076 = vsel %vm78, %v1060, 0
    %1078 = vmatpush.msra.mxu0 0.0
    %1079 = vmatpush.msra.mxu0 0.0
    %1080 = vmatpush.msra.mxu0 0.0
    %1081 = vmatpush.msra.mxu0 0.0
    %1082 = vmatpush.msra.mxu0 0.0
    %1083 = vmatpush.msra.mxu0 0.0
    %1084 = vmatpush.msra.mxu0 0.0
    %1085 = vmatpush.msra.mxu0 0.0
    %1086 = vmatpush.msra.mxu0 0.0
    %1087 = vmatpush.msra.mxu0 0.0
    %1088 = vmatpush.msra.mxu0 0.0
    %1089 = vmatpush.msra.mxu0 0.0
    %1090 = vmatpush.msra.mxu0 %v1075
    %1091 = vmatpush.msra.mxu0 %v1074
    %1092 = vmatpush.msra.mxu0 %v1073
    %1093 = vmatpush.msra.mxu0 %v1072
    %1094 = vmatmul.f32.gmra.mxu0 %v1076
    %v1095 = vpop.f32.mrf.mxu0
    %v1096 = vadd.f32 0.0, %v1095
    %1097 = vdwg.mxu0
    %v1098 = vadd.f32 %v1071, %v1096
    %v1099 = vxor.u32 %v1098, 2147483648
    %v1100 = vmul.f32 %v1099, 1.442695
    %v1101 = vpow.pop %v1100
    %v1102 = vadd.f32 %v1101, 1.0
    %v1103 = vrcp.pop %v1102
    %v1104 = vmul.f32 %v1102, %v1103
    %v1105 = vsub.f32 1.0, %v1104
    %v1106 = vmul.f32 %v1103, %v1105
    %v1107 = vadd.f32 %v1103, %v1106
    %vm1108 = vweird.f32 %v1102
    %vm1109 = vweird.f32 %v1103
    %vm1110 = vmor %vm1108, %vm1109
    %v1111 = vsel %vm1110, %v1103, %v1107
    %v1112 = vand.u32 2147483647, %v1102
    %vm1113 = vcmp.eq.f32.partialorder %v1112, 8.507059e+37
    %v1114 = vand.u32 %v1102, 2147483648
    %v1115 = vor.u32 1.1754944e-38, %v1114
    %v1116 = vsel %vm1113, %v1115, %v1111
    %v1117 = vmul.f32 1.0, %v1116
    %v1118 = vtanh.pop %v1098
    %v1119 = vmul.f32 %v1117, %v985
    %1121 = vrot.lane.b32.xlu0 %v1118, 64
    %v1122 = vpop.permute.xlu0 %1121
    %v1124 = vmul.f32 %v1117, %v1122
    %1126 = vrot.lane.b32.xlu0 %v1124, 32
    %v1127 = vpop.permute.xlu0 %1126
    %v1129 = vadd.f32 %v1119, %v1127
    %v1130 = vtanh.pop %v1129
    %1132 = vrot.lane.b32.xlu0 %v1130, 64
    %v1133 = vpop.permute.xlu0 %1132
    %v1135 = vmul.f32 %v1117, %v1133
    %s1136 = scalar_lea.vmem [#allocation3], 8
    %v1137 = vld [vmem:[%s1136] sm:$0xff]
    %v1138 = vld [vmem:[#allocation6] sm:$0xff]
    %v1139 = vld [vmem:[#allocation6 + $0x8] sm:$0xff]
    %v1140 = vld [vmem:[#allocation6 + $0x10] sm:$0xff]
    %v1141 = vld [vmem:[#allocation6 + $0x18] sm:$0xff]
    %v1142 = vsel %vm78, %v1066, 0
    %1144 = vmatpush.msra.mxu0 0.0
    %1145 = vmatpush.msra.mxu0 0.0
    %1146 = vmatpush.msra.mxu0 0.0
    %1147 = vmatpush.msra.mxu0 0.0
    %1148 = vmatpush.msra.mxu0 0.0
    %1149 = vmatpush.msra.mxu0 0.0
    %1150 = vmatpush.msra.mxu0 0.0
    %1151 = vmatpush.msra.mxu0 0.0
    %1152 = vmatpush.msra.mxu0 0.0
    %1153 = vmatpush.msra.mxu0 0.0
    %1154 = vmatpush.msra.mxu0 0.0
    %1155 = vmatpush.msra.mxu0 0.0
    %1156 = vmatpush.msra.mxu0 %v1141
    %1157 = vmatpush.msra.mxu0 %v1140
    %1158 = vmatpush.msra.mxu0 %v1139
    %1159 = vmatpush.msra.mxu0 %v1138
    %1160 = vmatmul.f32.gmra.mxu0 %v1142
    %v1161 = vpop.f32.mrf.mxu0
    %v1162 = vadd.f32 0.0, %v1161
    %1163 = vdwg.mxu0
    %v1164 = vadd.f32 %v1137, %v1162
    %v1165 = vxor.u32 %v1164, 2147483648
    %v1166 = vmul.f32 %v1165, 1.442695
    %v1167 = vpow.pop %v1166
    %v1168 = vadd.f32 %v1167, 1.0
    %v1169 = vrcp.pop %v1168
    %v1170 = vmul.f32 %v1168, %v1169
    %v1171 = vsub.f32 1.0, %v1170
    %v1172 = vmul.f32 %v1169, %v1171
    %v1173 = vadd.f32 %v1169, %v1172
    %vm1174 = vweird.f32 %v1168
    %vm1175 = vweird.f32 %v1169
    %vm1176 = vmor %vm1174, %vm1175
    %v1177 = vsel %vm1176, %v1169, %v1173
    %v1178 = vand.u32 2147483647, %v1168
    %vm1179 = vcmp.eq.f32.partialorder %v1178, 8.507059e+37
    %v1180 = vand.u32 %v1168, 2147483648
    %v1181 = vor.u32 1.1754944e-38, %v1180
    %v1182 = vsel %vm1179, %v1181, %v1177
    %v1183 = vmul.f32 1.0, %v1182
    %v1184 = vtanh.pop %v1164
    %v1185 = vmul.f32 %v1183, %v1051
    %1187 = vrot.lane.b32.xlu0 %v1184, 64
    %v1188 = vpop.permute.xlu0 %1187
    %v1190 = vmul.f32 %v1183, %v1188
    %1192 = vrot.lane.b32.xlu0 %v1190, 32
    %v1193 = vpop.permute.xlu0 %1192
    %v1195 = vadd.f32 %v1185, %v1193
    %v1196 = vtanh.pop %v1195
    %1198 = vrot.lane.b32.xlu0 %v1196, 64
    %v1199 = vpop.permute.xlu0 %1198
    %v1201 = vmul.f32 %v1183, %v1199
    %1203 = vrot.lane.b32.xlu0 %v1135, 32
    %v1204 = vpop.permute.xlu0 %1203
    %s1206 = scalar_lea.vmem [#allocation4], 48
    %1207 = vst.msk [vmem:[%s1206] sm:$0xff] %vm78, %v1204
    %1209 = vrot.lane.b32.xlu0 %v1201, 32
    %v1210 = vpop.permute.xlu0 %1209
    %s1212 = scalar_lea.vmem [#allocation5], 8
    %1213 = vst.msk [vmem:[%s1212] sm:$0xff] %vm78, %v1210
    %s1214 = scalar_lea.vmem [#allocation2], 56
    %v1215 = vld [vmem:[%s1214] sm:$0xff]
    %v1216 = vld [vmem:[%s2] sm:$0xff]
    %v1217 = vld [vmem:[%s2 + $0x8] sm:$0xff]
    %v1218 = vld [vmem:[%s2 + $0x10] sm:$0xff]
    %v1219 = vld [vmem:[%s2 + $0x18] sm:$0xff]
    %v1220 = vsel %vm78, %v1204, 0
    %1222 = vmatpush.msra.mxu0 0.0
    %1223 = vmatpush.msra.mxu0 0.0
    %1224 = vmatpush.msra.mxu0 0.0
    %1225 = vmatpush.msra.mxu0 0.0
    %1226 = vmatpush.msra.mxu0 0.0
    %1227 = vmatpush.msra.mxu0 0.0
    %1228 = vmatpush.msra.mxu0 0.0
    %1229 = vmatpush.msra.mxu0 0.0
    %1230 = vmatpush.msra.mxu0 0.0
    %1231 = vmatpush.msra.mxu0 0.0
    %1232 = vmatpush.msra.mxu0 0.0
    %1233 = vmatpush.msra.mxu0 0.0
    %1234 = vmatpush.msra.mxu0 %v1219
    %1235 = vmatpush.msra.mxu0 %v1218
    %1236 = vmatpush.msra.mxu0 %v1217
    %1237 = vmatpush.msra.mxu0 %v1216
    %1238 = vmatmul.f32.gmra.mxu0 %v1220
    %v1239 = vpop.f32.mrf.mxu0
    %v1240 = vadd.f32 0.0, %v1239
    %1241 = vdwg.mxu0
    %v1242 = vadd.f32 %v1215, %v1240
    %v1243 = vxor.u32 %v1242, 2147483648
    %v1244 = vmul.f32 %v1243, 1.442695
    %v1245 = vpow.pop %v1244
    %v1246 = vadd.f32 %v1245, 1.0
    %v1247 = vrcp.pop %v1246
    %v1248 = vmul.f32 %v1246, %v1247
    %v1249 = vsub.f32 1.0, %v1248
    %v1250 = vmul.f32 %v1247, %v1249
    %v1251 = vadd.f32 %v1247, %v1250
    %vm1252 = vweird.f32 %v1246
    %vm1253 = vweird.f32 %v1247
    %vm1254 = vmor %vm1252, %vm1253
    %v1255 = vsel %vm1254, %v1247, %v1251
    %v1256 = vand.u32 2147483647, %v1246
    %vm1257 = vcmp.eq.f32.partialorder %v1256, 8.507059e+37
    %v1258 = vand.u32 %v1246, 2147483648
    %v1259 = vor.u32 1.1754944e-38, %v1258
    %v1260 = vsel %vm1257, %v1259, %v1255
    %v1261 = vmul.f32 1.0, %v1260
    %v1262 = vtanh.pop %v1242
    %v1263 = vmul.f32 %v1261, %v1129
    %1265 = vrot.lane.b32.xlu0 %v1262, 64
    %v1266 = vpop.permute.xlu0 %1265
    %v1268 = vmul.f32 %v1261, %v1266
    %1270 = vrot.lane.b32.xlu0 %v1268, 32
    %v1271 = vpop.permute.xlu0 %1270
    %v1273 = vadd.f32 %v1263, %v1271
    %v1274 = vtanh.pop %v1273
    %1276 = vrot.lane.b32.xlu0 %v1274, 64
    %v1277 = vpop.permute.xlu0 %1276
    %v1279 = vmul.f32 %v1261, %v1277
    %v1280 = vld [vmem:[#allocation3] sm:$0xff]
    %v1281 = vld [vmem:[#allocation6] sm:$0xff]
    %v1282 = vld [vmem:[#allocation6 + $0x8] sm:$0xff]
    %v1283 = vld [vmem:[#allocation6 + $0x10] sm:$0xff]
    %v1284 = vld [vmem:[#allocation6 + $0x18] sm:$0xff]
    %v1285 = vsel %vm78, %v1210, 0
    %1287 = vmatpush.msra.mxu0 0.0
    %1288 = vmatpush.msra.mxu0 0.0
    %1289 = vmatpush.msra.mxu0 0.0
    %1290 = vmatpush.msra.mxu0 0.0
    %1291 = vmatpush.msra.mxu0 0.0
    %1292 = vmatpush.msra.mxu0 0.0
    %1293 = vmatpush.msra.mxu0 0.0
    %1294 = vmatpush.msra.mxu0 0.0
    %1295 = vmatpush.msra.mxu0 0.0
    %1296 = vmatpush.msra.mxu0 0.0
    %1297 = vmatpush.msra.mxu0 0.0
    %1298 = vmatpush.msra.mxu0 0.0
    %1299 = vmatpush.msra.mxu0 %v1284
    %1300 = vmatpush.msra.mxu0 %v1283
    %1301 = vmatpush.msra.mxu0 %v1282
    %1302 = vmatpush.msra.mxu0 %v1281
    %1303 = vmatmul.f32.gmra.mxu0 %v1285
    %v1304 = vpop.f32.mrf.mxu0
    %v1305 = vadd.f32 0.0, %v1304
    %1306 = vdwg.mxu0
    %v1307 = vadd.f32 %v1280, %v1305
    %v1308 = vxor.u32 %v1307, 2147483648
    %v1309 = vmul.f32 %v1308, 1.442695
    %v1310 = vpow.pop %v1309
    %v1311 = vadd.f32 %v1310, 1.0
    %v1312 = vrcp.pop %v1311
    %v1313 = vmul.f32 %v1311, %v1312
    %v1314 = vsub.f32 1.0, %v1313
    %v1315 = vmul.f32 %v1312, %v1314
    %v1316 = vadd.f32 %v1312, %v1315
    %vm1317 = vweird.f32 %v1311
    %vm1318 = vweird.f32 %v1312
    %vm1319 = vmor %vm1317, %vm1318
    %v1320 = vsel %vm1319, %v1312, %v1316
    %v1321 = vand.u32 2147483647, %v1311
    %vm1322 = vcmp.eq.f32.partialorder %v1321, 8.507059e+37
    %v1323 = vand.u32 %v1311, 2147483648
    %v1324 = vor.u32 1.1754944e-38, %v1323
    %v1325 = vsel %vm1322, %v1324, %v1320
    %v1326 = vmul.f32 1.0, %v1325
    %v1327 = vtanh.pop %v1307
    %v1328 = vmul.f32 %v1326, %v1195
    %1330 = vrot.lane.b32.xlu0 %v1327, 64
    %v1331 = vpop.permute.xlu0 %1330
    %v1333 = vmul.f32 %v1326, %v1331
    %1335 = vrot.lane.b32.xlu0 %v1333, 32
    %v1336 = vpop.permute.xlu0 %1335
    %v1338 = vadd.f32 %v1328, %v1336
    %v1339 = vtanh.pop %v1338
    %1341 = vrot.lane.b32.xlu0 %v1339, 64
    %v1342 = vpop.permute.xlu0 %1341
    %v1344 = vmul.f32 %v1326, %v1342
    %1346 = vrot.lane.b32.xlu0 %v1279, 32
    %v1347 = vpop.permute.xlu0 %1346
    %s1349 = scalar_lea.vmem [#allocation4], 56
    %1350 = vst.msk [vmem:[%s1349] sm:$0xff] %vm78, %v1347
    %1352 = vrot.lane.b32.xlu0 %v1344, 32
    %v1353 = vpop.permute.xlu0 %1352
    %1355 = vst.msk [vmem:[#allocation5] sm:$0xff] %vm78, %v1353
    %v1356 = vld [vmem:[#allocation4] sm:$0xff]
    %v1357 = vld [vmem:[#allocation4 + $0x8] sm:$0xff]
    %v1358 = vld [vmem:[#allocation4 + $0x10] sm:$0xff]
    %v1359 = vld [vmem:[#allocation4 + $0x18] sm:$0xff]
    %v1360 = vld [vmem:[#allocation4 + $0x20] sm:$0xff]
    %v1361 = vld [vmem:[#allocation4 + $0x28] sm:$0xff]
    %v1362 = vld [vmem:[#allocation4 + $0x30] sm:$0xff]
    %v1363 = vld [vmem:[#allocation4 + $0x38] sm:$0xff]
    %v1364 = vld [vmem:[#allocation5] sm:$0xff]
    %v1365 = vld [vmem:[#allocation5 + $0x8] sm:$0xff]
    %v1366 = vld [vmem:[#allocation5 + $0x10] sm:$0xff]
    %v1367 = vld [vmem:[#allocation5 + $0x18] sm:$0xff]
    %v1368 = vld [vmem:[#allocation5 + $0x20] sm:$0xff]
    %v1369 = vld [vmem:[#allocation5 + $0x28] sm:$0xff]
    %v1370 = vld [vmem:[#allocation5 + $0x30] sm:$0xff]
    %v1371 = vld [vmem:[#allocation5 + $0x38] sm:$0xff]
    %v1372 = vadd.f32 %v1356, %v1364
    %v1373 = vadd.f32 %v1357, %v1365
    %v1374 = vadd.f32 %v1358, %v1366
    %v1375 = vadd.f32 %v1359, %v1367
    %v1376 = vadd.f32 %v1360, %v1368
    %v1377 = vadd.f32 %v1361, %v1369
    %v1378 = vadd.f32 %v1362, %v1370
    %v1379 = vadd.f32 %v1363, %v1371
    %v1380 = vmul.f32 %v1372, 0.5
    %v1381 = vmul.f32 %v1373, 0.5
    %v1382 = vmul.f32 %v1374, 0.5
    %v1383 = vmul.f32 %v1375, 0.5
    %v1384 = vmul.f32 %v1376, 0.5
    %v1385 = vmul.f32 %v1377, 0.5
    %v1386 = vmul.f32 %v1378, 0.5
    %v1387 = vmul.f32 %v1379, 0.5
    %v1388 = vsel %vm78, %v1380, -inf
    %v1389 = vsel %vm78, %v1381, -inf
    %v1390 = vsel %vm78, %v1382, -inf
    %v1391 = vsel %vm78, %v1383, -inf
    %v1392 = vsel %vm78, %v1384, -inf
    %v1393 = vmax.f32 %v1388, %v1392
    %v1394 = vsel %vm78, %v1385, -inf
    %v1395 = vmax.f32 %v1389, %v1394
    %v1396 = vsel %vm78, %v1386, -inf
    %v1397 = vmax.f32 %v1390, %v1396
    %v1398 = vsel %vm78, %v1387, -inf
    %v1399 = vmax.f32 %v1391, %v1398
    %v1400 = vmax.f32 %v1393, %v1395
    %v1401 = vmax.f32 %v1397, %v1399
    %v1402 = vmax.f32 %v1400, %v1401
    %v1403 = vld [vmem:[#allocation9] sm:$0xff]
    %v1404 = vld [vmem:[#allocation9 + $0x8] sm:$0xff]
    %v1405 = vld [vmem:[#allocation9 + $0x10] sm:$0xff]
    %v1406 = vld [vmem:[#allocation9 + $0x18] sm:$0xff]
    %v1408 = vsel %vm78, %v1402, 0
    %1410 = vmatpush.msra.mxu0 0.0
    %1411 = vmatpush.msra.mxu0 0.0
    %1412 = vmatpush.msra.mxu0 0.0
    %1413 = vmatpush.msra.mxu0 0.0
    %1414 = vmatpush.msra.mxu0 0.0
    %1415 = vmatpush.msra.mxu0 0.0
    %1416 = vmatpush.msra.mxu0 0.0
    %1417 = vmatpush.msra.mxu0 0.0
    %1418 = vmatpush.msra.mxu0 0.0
    %1419 = vmatpush.msra.mxu0 0.0
    %1420 = vmatpush.msra.mxu0 0.0
    %1421 = vmatpush.msra.mxu0 0.0
    %1422 = vmatpush.msra.mxu0 %v1406
    %1423 = vmatpush.msra.mxu0 %v1405
    %1424 = vmatpush.msra.mxu0 %v1404
    %1425 = vmatpush.msra.mxu0 %v1403
    %1426 = vmatmul.f32.gmra.mxu0 %v1408
    %v1427 = vpop.f32.mrf.mxu0
    %v1428 = vadd.f32 0.0, %v1427
    %1429 = vdwg.mxu0
    %1430 = vst [vmem:[#allocation11] sm:$0xff] %v1428
    // Predicated region
    $region42: #{tpu_custom_call.1} parent=1 // pred_check
      _
    $region43: #{tpu_custom_call.1} parent=1 // pred_check_branch
      %1432 = sbr.rel (0) target = $region45
    $region44: #{tpu_custom_call.1} parent=1 // pred_region
      %1434 = vsyncadd [#allocation8], 0
      %s1436 = sshll.u32 [#allocation11], 4
      %s1437 = int_to_ptr.vmem [resolvable:$true] %s1436
      %s1438 = sshll.u32 %s8, 4
      %s1439 = int_to_ptr.hbm [resolvable:$true] %s1438
      %1441 = dma.vmem_to_hbm [thread:$0]  %s1437, 128, %s1439, [#allocation8]
    $region45: #{tpu_custom_call.1} parent=1 // pred_fallthru
      _
    // Predicated region
    $region46: #{tpu_custom_call.1} parent=1 // pred_check
      _
    $region47: #{tpu_custom_call.1} parent=1 // pred_check_branch
      %1443 = sbr.rel (0) target = $region49
    $region48: #{tpu_custom_call.1} parent=1 // pred_region
      %1445 = dma.done [#allocation8], 128
    $region49: #{tpu_custom_call.1} parent=1 // pred_fallthru
      _
    %1446 = vsyncpa [#allocation7], 1
    %1447 = vsyncpa [#allocation10], 1
    %1448 = vsyncpa [#allocation8], 1

</llo_original>
